<compile_context>
chip_gen: v7x
topology: tpu7x:2x2x1
jax: 0.10.0
libtpu: 0.0.40
codegen_flags: <defaults>
</compile_context>

<pallas_src>
import numpy as np
import jax
import jax.numpy as jnp
from jax.experimental import pallas as pl
from jax.experimental.pallas import tpu as pltpu

N_FFT = 400
HOP_LENGTH = 160
N_MELS = 80
SR = 16000
N_FREQ = N_FFT // 2 + 1          # 201
N_FREQ_PAD = 256                 # lane-aligned padded frequency bins
N_MELS_PAD = 128                 # lane-dense output width
DFT_COLS = 2 * N_FREQ_PAD        # 512: [cos | sin] fused matrix
MAX_TB = 1024                    # max time-rows per grid block


# ---------------------------------------------------------------------------
# Deterministic parameter construction (replaces the librosa mel_80 buffer).
# ---------------------------------------------------------------------------
def _hz_to_mel(freqs):
    # Slaney-style mel scale (librosa default, htk=False).
    f_min, f_sp = 0.0, 200.0 / 3.0
    mels = (freqs - f_min) / f_sp
    min_log_hz = 1000.0
    min_log_mel = (min_log_hz - f_min) / f_sp
    logstep = np.log(6.4) / 27.0
    return np.where(
        freqs >= min_log_hz,
        min_log_mel + np.log(np.maximum(freqs, 1e-10) / min_log_hz) / logstep,
        mels,
    )


def _mel_to_hz(mels):
    f_min, f_sp = 0.0, 200.0 / 3.0
    freqs = f_min + f_sp * mels
    min_log_hz = 1000.0
    min_log_mel = (min_log_hz - f_min) / f_sp
    logstep = np.log(6.4) / 27.0
    return np.where(
        mels >= min_log_mel,
        min_log_hz * np.exp(logstep * (mels - min_log_mel)),
        freqs,
    )


def mel_filters_80():
    """Reimplements librosa.filters.mel(sr=16000, n_fft=400, n_mels=80) (slaney norm)."""
    fftfreqs = np.linspace(0.0, SR / 2.0, N_FREQ)
    mel_min = _hz_to_mel(np.asarray(0.0))
    mel_max = _hz_to_mel(np.asarray(SR / 2.0))
    mel_pts = _mel_to_hz(np.linspace(mel_min, mel_max, N_MELS + 2))
    fdiff = np.diff(mel_pts)
    ramps = mel_pts[:, None] - fftfreqs[None, :]
    lower = -ramps[:-2] / fdiff[:-1, None]
    upper = ramps[2:] / fdiff[1:, None]
    weights = np.maximum(0.0, np.minimum(lower, upper))
    enorm = 2.0 / (mel_pts[2 : N_MELS + 2] - mel_pts[:N_MELS])
    weights = weights * enorm[:, None]
    return weights.astype(np.float32)  # (80, 201)


def hann_window():
    # torch.hann_window(N_FFT) is periodic: 0.5 - 0.5*cos(2*pi*n/N)
    n = np.arange(N_FFT, dtype=np.float64)
    return 0.5 - 0.5 * np.cos(2.0 * np.pi * n / N_FFT)  # (400,) float64


def fused_windowed_dft():
    """(400, 512) matrix: windowed-cos in cols 0..200, windowed-sin in cols 256..456."""
    n = np.arange(N_FFT, dtype=np.float64)[:, None]
    k = np.arange(N_FREQ, dtype=np.float64)[None, :]
    ang = 2.0 * np.pi * n * k / N_FFT
    w = hann_window()[:, None]  # Hann window folded into the contraction dim
    dft = np.zeros((N_FFT, DFT_COLS), dtype=np.float64)
    dft[:, :N_FREQ] = w * np.cos(ang)
    dft[:, N_FREQ_PAD : N_FREQ_PAD + N_FREQ] = w * np.sin(ang)
    return dft.astype(np.float32)


def dup_fbank_t():
    """(512, 128) mel filter bank transpose, duplicated into the cos and sin halves.

    mel = power @ fbank_dup with power = y*y contracts re^2 (cols 0..200) and
    im^2 (cols 256..456) against the same weights -> (re^2 + im^2) @ fb.T.
    """
    fb = np.zeros((DFT_COLS, N_MELS_PAD), dtype=np.float32)
    fb_t = mel_filters_80().T  # (201, 80)
    fb[:N_FREQ, :N_MELS] = fb_t
    fb[N_FREQ_PAD : N_FREQ_PAD + N_FREQ, :N_MELS] = fb_t
    return fb


# ---------------------------------------------------------------------------
# Pallas kernel: (TB, 400) bf16 framed-audio block -> (TB, 128) f32 log10(mel).
# ---------------------------------------------------------------------------
def _mel_kernel(frames_ref, dft_ref, fbank_ref, out_ref):
    # One fused bf16 MXU pass (f32 acc): y[:, :256] = re, y[:, 256:] = -im.
    y = jnp.dot(frames_ref[...], dft_ref[...],
                preferred_element_type=jnp.float32)            # (TB, 512) f32
    power = (y * y).astype(jnp.bfloat16)                       # re^2 | im^2
    # Duplicated fbank sums the cos and sin halves: (re^2 + im^2) @ fb.T.
    mel = jnp.dot(power, fbank_ref[...],
                  preferred_element_type=jnp.float32)          # (TB, 128) f32
    out_ref[...] = jnp.log10(jnp.maximum(mel, 1e-10))
    # Global-max clamp + (x+4)/4 scaling are done in the XLA epilogue (they
    # need a reduction over all frames and would break the T-grid here).


def _round_up(x, m):
    return (x + m - 1) // m * m


def _cdiv(a, b):
    return (a + b - 1) // b


def _build_call(tb, t_pad, resident_mode, cost):
    resident_kw = {} if resident_mode is None else {"pipeline_mode": resident_mode}
    return pl.pallas_call(
        _mel_kernel,
        out_shape=jax.ShapeDtypeStruct((t_pad, N_MELS_PAD), jnp.float32),
        grid=(t_pad // tb,),
        in_specs=[
            pl.BlockSpec((tb, N_FFT), lambda i: (i, 0)),                    # frames: tiled over T
            pl.BlockSpec((N_FFT, DFT_COLS), lambda i: (0, 0), **resident_kw),      # DFT: resident
            pl.BlockSpec((DFT_COLS, N_MELS_PAD), lambda i: (0, 0), **resident_kw), # fbank: resident
        ],
        out_specs=pl.BlockSpec((tb, N_MELS_PAD), lambda i: (i, 0)),
        compiler_params=pltpu.CompilerParams(
            dimension_semantics=("parallel",),
        ),
        cost_estimate=cost,
    )


def log_mel_spectrogram(audio, n_mels: int = 80, padding: int = 0):
    assert n_mels == 80, "only 80 mel bins are supported"
    audio = jnp.asarray(audio, jnp.float32)
    if padding > 0:
        audio = jnp.pad(audio, (0, padding))
    length = audio.shape[0]
    if length < N_FFT // 2 + 1:
        raise ValueError(f"audio must have at least {N_FFT // 2 + 1} samples for reflect padding")
    t = length // HOP_LENGTH  # magnitudes = stft[..., :-1] drops the last frame
    if t < 1:
        raise ValueError(f"audio must have at least {HOP_LENGTH} samples (one output frame)")

    # torch.stft(center=True, pad_mode='reflect') reflect-pads by N_FFT//2 per side.
    padded = jnp.pad(audio, (N_FFT // 2, N_FFT // 2), mode="reflect")
    padded = padded.astype(jnp.bfloat16)  # bf16 framing: halves the intermediate + kernel read

    # Cheap strided-patch framing: reshape to hop-rows and concatenate slices
    # (no (T, 400) gather / index array).  frame r = padded[r*HOP : r*HOP + 400].
    rows_needed = t + 2
    chunk = padded[: rows_needed * HOP_LENGTH].reshape(rows_needed, HOP_LENGTH)
    frames = jnp.concatenate(
        [chunk[:t], chunk[1 : t + 1], chunk[2 : t + 2, : N_FFT - 2 * HOP_LENGTH]],
        axis=1,
    )  # (t, 400) bf16

    # Grid shaping: block count >= 2 and even so both v7x TensorCores get
    # balanced work; MAX_TB keeps the step count low on v5e/v6e.
    t8 = _round_up(t, 8)
    g = _round_up(max(2, _cdiv(t8, MAX_TB)), 2)   # even number of blocks
    tb = _round_up(_cdiv(t8, g), 8)
    t_pad = tb * g
    if t_pad != t:
        frames = jnp.pad(frames, ((0, t_pad - t), (0, 0)))

    dft = jnp.asarray(fused_windowed_dft(), dtype=jnp.bfloat16)   # (400, 512), window folded in
    fbank = jnp.asarray(dup_fbank_t(), dtype=jnp.bfloat16)        # (512, 128), cos/sin duplicated

    cost = pl.CostEstimate(
        flops=2 * t_pad * N_FFT * DFT_COLS + 2 * t_pad * DFT_COLS * N_MELS_PAD,
        transcendentals=t_pad * N_MELS_PAD,
        bytes_accessed=(
            t_pad * N_FFT * 2
            + N_FFT * DFT_COLS * 2
            + DFT_COLS * N_MELS_PAD * 2
            + t_pad * N_MELS_PAD * 4
        ),
    )

    try:
        # Resident operands (constant index_map) single-buffered: saves the
        # redundant second VMEM buffer / re-copy bookkeeping.
        out = _build_call(tb, t_pad, pl.Buffered(1), cost)(frames, dft, fbank)
    except Exception:
        # Fallback: default double-buffered pipeline (costs ~0.6 MiB extra VMEM).
        out = _build_call(tb, t_pad, None, cost)(frames, dft, fbank)

    # Epilogue in plain JAX on the tiny (t, 80) result: global-max clamp + scale.
    log_spec = out[:t, :N_MELS]                                   # (t, 80)
    log_spec = jnp.maximum(log_spec, jnp.max(log_spec) - 8.0)
    log_spec = (log_spec + 4.0) / 4.0
    return log_spec.T  # (80, n_frames) to match the PyTorch module


if __name__ == "__main__":
    key = jax.random.PRNGKey(0)
    # Small audio: 2560 samples @ 16 kHz -> 16 output frames.
    audio = jax.random.normal(key, (2560,), dtype=jnp.float32)

    log_spec = log_mel_spectrogram(audio, n_mels=80, padding=0)
    log_spec = jax.block_until_ready(log_spec)

    assert log_spec.shape == (80, 2560 // HOP_LENGTH), log_spec.shape
    assert log_spec.dtype == jnp.float32
    assert bool(jnp.all(jnp.isfinite(log_spec)))
    print("KERNEL_OK")
</pallas_src>

<mosaic_0001>
module attributes {stable_mosaic.version = 11 : i64} {
  func.func @_mel_kernel(%arg0: i32, %arg1: memref<8x400xbf16, #tpu.memory_space<vmem>>, %arg2: memref<400x512xbf16, #tpu.memory_space<vmem>>, %arg3: memref<512x128xbf16, #tpu.memory_space<vmem>>, %arg4: memref<8x128xf32, #tpu.memory_space<vmem>>) attributes {dimension_semantics = [#tpu.dimension_semantics<parallel>], iteration_bounds = array<i64: 2>, scalar_prefetch = 0 : i64, scratch_operands = 0 : i64, tpu.core_type = #tpu.core_type<tc>, window_params = [{transform_indices = @transform_0, window_bounds = array<i64: 8, 400>}, {pipeline_mode = #tpu.pipeline_mode<synchronous>, transform_indices = @transform_1, window_bounds = array<i64: 400, 512>}, {pipeline_mode = #tpu.pipeline_mode<synchronous>, transform_indices = @transform_2, window_bounds = array<i64: 512, 128>}, {transform_indices = @transform_3, window_bounds = array<i64: 8, 128>}]} {
    %c0 = arith.constant 0 : index
    %c0_0 = arith.constant 0 : index
    %0 = vector.load %arg1[%c0, %c0_0] : memref<8x400xbf16, #tpu.memory_space<vmem>>, vector<8x400xbf16>
    %c0_1 = arith.constant 0 : index
    %c0_2 = arith.constant 0 : index
    %1 = vector.load %arg2[%c0_1, %c0_2] : memref<400x512xbf16, #tpu.memory_space<vmem>>, vector<400x512xbf16>
    %cst = arith.constant dense<0.000000e+00> : vector<8x512xf32>
    %2 = tpu.matmul %0, %1, %cst {dimension_numbers = #tpu.dot_dimension_numbers<[1], [0], [0], [1], [0, 0, 1, 1], [], []>} : vector<8x400xbf16>, vector<400x512xbf16>, vector<8x512xf32> -> vector<8x512xf32>
    %3 = arith.mulf %2, %2 : vector<8x512xf32>
    %4 = arith.truncf %3 : vector<8x512xf32> to vector<8x512xbf16>
    %c0_3 = arith.constant 0 : index
    %c0_4 = arith.constant 0 : index
    %5 = vector.load %arg3[%c0_3, %c0_4] : memref<512x128xbf16, #tpu.memory_space<vmem>>, vector<512x128xbf16>
    %cst_5 = arith.constant dense<0.000000e+00> : vector<8x128xf32>
    %6 = tpu.matmul %4, %5, %cst_5 {dimension_numbers = #tpu.dot_dimension_numbers<[1], [0], [0], [1], [0, 0, 1, 1], [], []>} : vector<8x512xbf16>, vector<512x128xbf16>, vector<8x128xf32> -> vector<8x128xf32>
    %cst_6 = arith.constant 1.000000e-10 : f32
    %7 = vector.broadcast %cst_6 : f32 to vector<8x128xf32>
    %8 = arith.maximumf %6, %7 : vector<8x128xf32>
    %9 = math.log %8 : vector<8x128xf32>
    %cst_7 = arith.constant 0.434294492 : f32
    %10 = vector.broadcast %cst_7 : f32 to vector<8x128xf32>
    %11 = arith.mulf %9, %10 : vector<8x128xf32>
    %c0_8 = arith.constant 0 : index
    %c0_9 = arith.constant 0 : index
    %12 = vector.load %arg4[%c0_8, %c0_9] : memref<8x128xf32, #tpu.memory_space<vmem>>, vector<8x128xf32>
    tpu.vector_store %arg4[%c0_8, %c0_9], %11 {strides = array<i32>} : memref<8x128xf32, #tpu.memory_space<vmem>>, vector<8x128xf32>,
    return
  }
  func.func @transform_0(%arg0: i32) -> (i32, i32) {
    %c0_i32 = arith.constant 0 : i32
    %c0_i32_0 = arith.constant 0 : i32
    return %arg0, %c0_i32 : i32, i32
  }
  func.func @transform_1(%arg0: i32) -> (i32, i32) {
    %c0_i32 = arith.constant 0 : i32
    %c0_i32_0 = arith.constant 0 : i32
    %c0_i32_1 = arith.constant 0 : i32
    return %c0_i32, %c0_i32_0 : i32, i32
  }
  func.func @transform_2(%arg0: i32) -> (i32, i32) {
    %c0_i32 = arith.constant 0 : i32
    %c0_i32_0 = arith.constant 0 : i32
    %c0_i32_1 = arith.constant 0 : i32
    return %c0_i32, %c0_i32_0 : i32, i32
  }
  func.func @transform_3(%arg0: i32) -> (i32, i32) {
    %c0_i32 = arith.constant 0 : i32
    %c0_i32_0 = arith.constant 0 : i32
    return %arg0, %c0_i32 : i32, i32
  }
}

module attributes {stable_mosaic.version = 11 : i64} {
  func.func @_mel_kernel(%arg0: i32, %arg1: memref<8x400xbf16, #tpu.memory_space<vmem>>, %arg2: memref<400x512xbf16, #tpu.memory_space<vmem>>, %arg3: memref<512x128xbf16, #tpu.memory_space<vmem>>, %arg4: memref<8x128xf32, #tpu.memory_space<vmem>>) attributes {dimension_semantics = [#tpu.dimension_semantics<parallel>], iteration_bounds = array<i64: 2>, scalar_prefetch = 0 : i64, scratch_operands = 0 : i64, tpu.core_type = #tpu.core_type<tc>, window_params = [{transform_indices = @transform_0, window_bounds = array<i64: 8, 400>}, {pipeline_mode = #tpu.pipeline_mode<synchronous>, transform_indices = @transform_1, window_bounds = array<i64: 400, 512>}, {pipeline_mode = #tpu.pipeline_mode<synchronous>, transform_indices = @transform_2, window_bounds = array<i64: 512, 128>}, {transform_indices = @transform_3, window_bounds = array<i64: 8, 128>}]} {
    %c0 = arith.constant 0 : index
    %c0_0 = arith.constant 0 : index
    %0 = vector.load %arg1[%c0, %c0_0] : memref<8x400xbf16, #tpu.memory_space<vmem>>, vector<8x400xbf16>
    %c0_1 = arith.constant 0 : index
    %c0_2 = arith.constant 0 : index
    %1 = vector.load %arg2[%c0_1, %c0_2] : memref<400x512xbf16, #tpu.memory_space<vmem>>, vector<400x512xbf16>
    %cst = arith.constant dense<0.000000e+00> : vector<8x512xf32>
    %2 = tpu.matmul %0, %1, %cst {dimension_numbers = #tpu.dot_dimension_numbers<[1], [0], [0], [1], [0, 0, 1, 1], [], []>} : vector<8x400xbf16>, vector<400x512xbf16>, vector<8x512xf32> -> vector<8x512xf32>
    %3 = arith.mulf %2, %2 : vector<8x512xf32>
    %4 = arith.truncf %3 : vector<8x512xf32> to vector<8x512xbf16>
    %c0_3 = arith.constant 0 : index
    %c0_4 = arith.constant 0 : index
    %5 = vector.load %arg3[%c0_3, %c0_4] : memref<512x128xbf16, #tpu.memory_space<vmem>>, vector<512x128xbf16>
    %cst_5 = arith.constant dense<0.000000e+00> : vector<8x128xf32>
    %6 = tpu.matmul %4, %5, %cst_5 {dimension_numbers = #tpu.dot_dimension_numbers<[1], [0], [0], [1], [0, 0, 1, 1], [], []>} : vector<8x512xbf16>, vector<512x128xbf16>, vector<8x128xf32> -> vector<8x128xf32>
    %cst_6 = arith.constant 1.000000e-10 : f32
    %7 = vector.broadcast %cst_6 : f32 to vector<8x128xf32>
    %8 = arith.maximumf %6, %7 : vector<8x128xf32>
    %9 = math.log %8 : vector<8x128xf32>
    %cst_7 = arith.constant 0.434294492 : f32
    %10 = vector.broadcast %cst_7 : f32 to vector<8x128xf32>
    %11 = arith.mulf %9, %10 : vector<8x128xf32>
    %c0_8 = arith.constant 0 : index
    %c0_9 = arith.constant 0 : index
    %12 = vector.load %arg4[%c0_8, %c0_9] : memref<8x128xf32, #tpu.memory_space<vmem>>, vector<8x128xf32>
    tpu.vector_store %arg4[%c0_8, %c0_9], %11 {strides = array<i32>} : memref<8x128xf32, #tpu.memory_space<vmem>>, vector<8x128xf32>,
    return
  }
  func.func @transform_0(%arg0: i32) -> (i32, i32) {
    %c0_i32 = arith.constant 0 : i32
    %c0_i32_0 = arith.constant 0 : i32
    return %arg0, %c0_i32 : i32, i32
  }
  func.func @transform_1(%arg0: i32) -> (i32, i32) {
    %c0_i32 = arith.constant 0 : i32
    %c0_i32_0 = arith.constant 0 : i32
    %c0_i32_1 = arith.constant 0 : i32
    return %c0_i32, %c0_i32_0 : i32, i32
  }
  func.func @transform_2(%arg0: i32) -> (i32, i32) {
    %c0_i32 = arith.constant 0 : i32
    %c0_i32_0 = arith.constant 0 : i32
    %c0_i32_1 = arith.constant 0 : i32
    return %c0_i32, %c0_i32_0 : i32, i32
  }
  func.func @transform_3(%arg0: i32) -> (i32, i32) {
    %c0_i32 = arith.constant 0 : i32
    %c0_i32_0 = arith.constant 0 : i32
    return %arg0, %c0_i32 : i32, i32
  }
}

</mosaic_0001>

<llo_original>
// kernel: tpu_custom_call.1
$region0: #{tpu_custom_call.1}
  #allocation0 [shape = 'u32[]', space=smem, size = 0x4, offset = 0x4, fixed_abs, tag = 'smem constant byte address 0x4 - core index']
  #allocation1 [shape = 'u32[144,128]{1,0:T(1,128)}', space=vmem, size = 0x12000, scoped, tag = 'internal scratch']
  %s0 = inlined_call_operand.hbm [shape: bf16[16,400], index: 0, kind: input, shape index: {}]
  %s1 = inlined_call_operand.hbm [shape: bf16[400,512], index: 1, kind: input, shape index: {}]
  %s2 = inlined_call_operand.hbm [shape: bf16[512,128], index: 2, kind: input, shape index: {}]
  %s3 = inlined_call_operand.hbm [shape: f32[16,128], index: 3, kind: output, shape index: {}]
  %s4 = sld [smem:[#allocation0]]
  $region57: #{tpu_custom_call.1} parent=0
    _
  %s6 = ssub.s32 1, %s4
  %s7 = scalar_select 0, %s6, %s4
  $region1: #{tpu_custom_call.1} parent=0
    #allocation2 [shape = 'u8[16384]{0}', space=vmem, size = 0x4000, scoped, tag = 'input window, operand 0']
    #allocation3 [shape = 's32[2]{0}', space=sflag, size = 0x8, scoped, tag = 'scoped memory for tpu_custom_call.1']
    #allocation4 [shape = 's32[2]{0}', space=sflag, size = 0x8, scoped, tag = 'scoped memory for tpu_custom_call.1']
    #allocation5 [shape = 'u8[409600]{0}', space=vmem, size = 0x64000, scoped, tag = 'input window, operand 1, single buffered']
    #allocation6 [shape = 's32[1]{0}', space=sflag, size = 0x4, scoped, tag = 'scoped memory for tpu_custom_call.1']
    #allocation7 [shape = 'u8[131072]{0}', space=vmem, size = 0x20000, scoped, tag = 'input window, operand 2, single buffered']
    #allocation8 [shape = 'u8[8192]{0}', space=vmem, size = 0x2000, scoped, tag = 'output window, operand 0']
    %8 = vsyncpa [#allocation3], 0
    %s9 = scalar_lea.sflag [#allocation3], 1
    %10 = vsyncpa %s9, 0
    %11 = vsyncpa [#allocation6], 0
    %12 = vsyncpa [#allocation4], 0
    %s13 = scalar_lea.sflag [#allocation4], 1
    %14 = vsyncpa %s13, 0
    loop: start=0, step=1, limit=4
    $region2: #{tpu_custom_call.1} parent=1 // loop_pre_header
      _
    $region3: #{tpu_custom_call.1} parent=1 // loop_header
      %s16 = sphi 0, %s20
      %p17 = scmp.ge.s32.totalorder %s16, 4
      %s26 = sphi 0, %s28
      %s29 = sphi 0, %s26
      %s30 = sphi 0, %s29
      %s46 = sphi 0, %s30
      %s50 = sphi 0, %s50
      %s52 = sphi 0, %s50
      %s53 = sphi 0, %s52
      %s67 = sphi 0, %s53
      %s71 = sphi 0, %s71
      %s73 = sphi 0, %s71
      %s74 = sphi 0, %s73
      %s88 = sphi 0, %s74
      %s94 = sphi 0, %s96
      %s97 = sphi 0, %s94
      %s98 = sphi 0, %s97
      %s114 = sphi 0, %s98
    $region4: #{tpu_custom_call.1} parent=1 // loop_header_branch
      %19 = sbr.rel (%p17) target = $region8
    $region5: #{tpu_custom_call.1} parent=1 // loop_body
      %s21 = ssub.s32 %s16, 1
      %s22 = ssub.s32 %s16, 2
      %s23 = sadd.s32 %s16, 1
      %s24 = ssub.s32 %s16, %s23
      %p25 = scmp.eq.s32.totalorder %s24, 0
      %s27 = sadd.s32 %s26, 1
      %s28 = scalar_select %p25, %s26, %s27
      %p31 = pneg %p25
      %p32 = scmp.eq.s32.totalorder %s16, 1
      %p33 = por %p31, %p32
      %p34 = scmp.ne.s32.totalorder %s26, %s29
      %p35 = scmp.eq.s32.totalorder %s16, 0
      %p36 = por %p34, %p35
      %p37 = scmp.ne.s32.totalorder %s26, %s29
      %p38 = scmp.eq.s32.totalorder %s21, 1
      %p39 = por %p37, %p38
      %p40 = scmp.ne.s32.totalorder %s29, %s30
      %p41 = scmp.eq.s32.totalorder %s21, 0
      %p42 = por %p40, %p41
      %p43 = scmp.ne.s32.totalorder %s29, %s30
      %p44 = scmp.eq.s32.totalorder %s22, 1
      %p45 = por %p43, %p44
      %p47 = scmp.ne.s32.totalorder %s30, %s46
      %p48 = scmp.eq.s32.totalorder %s22, 0
      %p49 = por %p47, %p48
      %s51 = sadd.s32 %s50, 1
      %p54 = scmp.eq.s32.totalorder %s16, 1
      %p55 = scmp.ne.s32.totalorder %s50, %s52
      %p56 = scmp.eq.s32.totalorder %s16, 0
      %p57 = por %p55, %p56
      %p58 = scmp.ne.s32.totalorder %s50, %s52
      %p59 = scmp.eq.s32.totalorder %s21, 1
      %p60 = por %p58, %p59
      %p61 = scmp.ne.s32.totalorder %s52, %s53
      %p62 = scmp.eq.s32.totalorder %s21, 0
      %p63 = por %p61, %p62
      %p64 = scmp.ne.s32.totalorder %s52, %s53
      %p65 = scmp.eq.s32.totalorder %s22, 1
      %p66 = por %p64, %p65
      %p68 = scmp.ne.s32.totalorder %s53, %s67
      %p69 = scmp.eq.s32.totalorder %s22, 0
      %p70 = por %p68, %p69
      %s72 = sadd.s32 %s71, 1
      %p75 = scmp.eq.s32.totalorder %s16, 1
      %p76 = scmp.ne.s32.totalorder %s71, %s73
      %p77 = scmp.eq.s32.totalorder %s16, 0
      %p78 = por %p76, %p77
      %p79 = scmp.ne.s32.totalorder %s71, %s73
      %p80 = scmp.eq.s32.totalorder %s21, 1
      %p81 = por %p79, %p80
      %p82 = scmp.ne.s32.totalorder %s73, %s74
      %p83 = scmp.eq.s32.totalorder %s21, 0
      %p84 = por %p82, %p83
      %p85 = scmp.ne.s32.totalorder %s73, %s74
      %p86 = scmp.eq.s32.totalorder %s22, 1
      %p87 = por %p85, %p86
      %p89 = scmp.ne.s32.totalorder %s74, %s88
      %p90 = scmp.eq.s32.totalorder %s22, 0
      %p91 = por %p89, %p90
      %s92 = ssub.s32 %s16, %s23
      %p93 = scmp.eq.s32.totalorder %s92, 0
      %s95 = sadd.s32 %s94, 1
      %s96 = scalar_select %p93, %s94, %s95
      %p99 = pneg %p93
      %p100 = scmp.eq.s32.totalorder %s16, 1
      %p101 = por %p99, %p100
      %p102 = scmp.ne.s32.totalorder %s94, %s97
      %p103 = scmp.eq.s32.totalorder %s16, 0
      %p104 = por %p102, %p103
      %p105 = scmp.ne.s32.totalorder %s94, %s97
      %p106 = scmp.eq.s32.totalorder %s21, 1
      %p107 = por %p105, %p106
      %p108 = scmp.ne.s32.totalorder %s97, %s98
      %p109 = scmp.eq.s32.totalorder %s21, 0
      %p110 = por %p108, %p109
      %p111 = scmp.ne.s32.totalorder %s97, %s98
      %p112 = scmp.eq.s32.totalorder %s22, 1
      %p113 = por %p111, %p112
      %p115 = scmp.ne.s32.totalorder %s98, %s114
      %p116 = scmp.eq.s32.totalorder %s22, 0
      %p117 = por %p115, %p116
      %p118 = scmp.le.s32.totalorder 1, %s16
      %p119 = scmp.lt.s32.totalorder %s16, 3
      %p120 = pnand %p118, %p119
      %p121 = pneg %p120
      // Predicated region
      $region9: #{tpu_custom_call.1} parent=5 // pred_check
        _
      $region10: #{tpu_custom_call.1} parent=5 // pred_check_branch
        %123 = sbr.rel (%p120) target = $region12
      $region11: #{tpu_custom_call.1} parent=5 // pred_region
        %s124 = ssub.s32 %s16, 1
        // Predicated region
        $region13: #{tpu_custom_call.1} parent=11 // pred_check
          %p125 = pneg %p63
        $region14: #{tpu_custom_call.1} parent=11 // pred_check_branch
          %127 = sbr.rel (%p125) target = $region16
        $region15: #{tpu_custom_call.1} parent=11 // pred_region
          %s129 = ssub.s32 12800, 12800
          %130 = vsyncadd [#allocation6], %s129
          %s131 = sshll.u32 [#allocation5], 4
          %s132 = int_to_ptr.vmem [resolvable:$true] %s131
          %137 = dma.hbm_to_vmem [thread:$0]  %s1, 12800, %s132, [#allocation6], 256, 256, 16
        $region16: #{tpu_custom_call.1} parent=11 // pred_fallthru
          _
        // Predicated region
        $region17: #{tpu_custom_call.1} parent=11 // pred_check
          %p138 = pneg %p84
        $region18: #{tpu_custom_call.1} parent=11 // pred_check_branch
          %140 = sbr.rel (%p138) target = $region20
        $region19: #{tpu_custom_call.1} parent=11 // pred_region
          %s142 = ssub.s32 4096, 4096
          %143 = vsyncadd [#allocation6], %s142
          %s144 = sshll.u32 [#allocation7], 4
          %s145 = int_to_ptr.vmem [resolvable:$true] %s144
          %150 = dma.hbm_to_vmem [thread:$0]  %s2, 4096, %s145, [#allocation6], 64, 64, 4
        $region20: #{tpu_custom_call.1} parent=11 // pred_fallthru
          _
      $region12: #{tpu_custom_call.1} parent=5 // pred_fallthru
        _
      %p151 = scmp.lt.s32.totalorder %s16, 2
      // Predicated region
      $region21: #{tpu_custom_call.1} parent=5 // pred_check
        %p152 = pneg %p151
      $region22: #{tpu_custom_call.1} parent=5 // pred_check_branch
        %154 = sbr.rel (%p152) target = $region24
      $region23: #{tpu_custom_call.1} parent=5 // pred_region
        // Predicated region
        $region25: #{tpu_custom_call.1} parent=23 // pred_check
          %p155 = pneg %p36
        $region26: #{tpu_custom_call.1} parent=23 // pred_check_branch
          %157 = sbr.rel (%p155) target = $region28
        $region27: #{tpu_custom_call.1} parent=23 // pred_region
          %s158 = sand.u32 %s26, 1
          %s159 = scalar_lea.sflag [#allocation3], %s158
          %s160 = sand.u32 %s26, 1
          %s161 = smul.addr %s160, 16
          %s162 = scalar_lea.vmem [#allocation2], %s161
          %s164 = ssub.s32 256, 256
          %165 = vsyncadd %s159, %s164
          %s166 = smul.addr %s16, 4
          %s167 = smul.addr %s166, 64
          %s168 = scalar_lea.hbm %s0, %s167
          %s170 = sshll.u32 %s162, 4
          %s171 = int_to_ptr.vmem [resolvable:$true] %s170
          %173 = dma.hbm_to_vmem [thread:$0]  %s168, 256, %s171, %s159
        $region28: #{tpu_custom_call.1} parent=23 // pred_fallthru
          _
      $region24: #{tpu_custom_call.1} parent=5 // pred_fallthru
        _
      %p174 = scmp.le.s32.totalorder 1, %s16
      %p175 = scmp.lt.s32.totalorder %s16, 3
      %p176 = pnand %p174, %p175
      %p177 = pneg %p176
      // Predicated region
      $region29: #{tpu_custom_call.1} parent=5 // pred_check
        _
      $region30: #{tpu_custom_call.1} parent=5 // pred_check_branch
        %179 = sbr.rel (%p176) target = $region32
      $region31: #{tpu_custom_call.1} parent=5 // pred_region
        %s180 = ssub.s32 %s16, 1
        %s181 = sand.u32 %s29, 1
        %s182 = scalar_lea.sflag [#allocation3], %s181
        %s183 = sand.u32 %s29, 1
        %s184 = smul.addr %s183, 16
        %s185 = scalar_lea.vmem [#allocation2], %s184
        // Predicated region
        $region33: #{tpu_custom_call.1} parent=31 // pred_check
          %p186 = pneg %p42
        $region34: #{tpu_custom_call.1} parent=31 // pred_check_branch
          %188 = sbr.rel (%p186) target = $region36
        $region35: #{tpu_custom_call.1} parent=31 // pred_region
          %189 = dma.done %s182, 256
        $region36: #{tpu_custom_call.1} parent=31 // pred_fallthru
          _
        // Predicated region
        $region37: #{tpu_custom_call.1} parent=31 // pred_check
          %p190 = pneg %p63
        $region38: #{tpu_custom_call.1} parent=31 // pred_check_branch
          %192 = sbr.rel (%p190) target = $region40
        $region39: #{tpu_custom_call.1} parent=31 // pred_region
          %193 = dma.done [#allocation6], 12800
        $region40: #{tpu_custom_call.1} parent=31 // pred_fallthru
          _
        // Predicated region
        $region41: #{tpu_custom_call.1} parent=31 // pred_check
          %p194 = pneg %p84
        $region42: #{tpu_custom_call.1} parent=31 // pred_check_branch
          %196 = sbr.rel (%p194) target = $region44
        $region43: #{tpu_custom_call.1} parent=31 // pred_region
          %197 = dma.done [#allocation6], 4096
        $region44: #{tpu_custom_call.1} parent=31 // pred_fallthru
          _
        %s198 = sand.u32 %s29, 1
        %s199 = scalar_lea.sflag [#allocation3], %s198
        %s200 = sand.u32 %s29, 1
        %s201 = smul.addr %s200, 16
        %s202 = scalar_lea.vmem [#allocation2], %s201
        %p203 = pneg %p42
        %p204 = pneg %p39
        %p205 = pneg %p63
        %p206 = pneg %p60
        %p207 = pneg %p84
        %p208 = pneg %p81
        %p209 = pneg %p110
        %p210 = pneg %p107
        %s211 = sand.u32 %s97, 1
        %s212 = scalar_lea.sflag [#allocation4], %s211
        %s213 = sand.u32 %s97, 1
        %s214 = smul.addr %s213, 8
        %s215 = scalar_lea.vmem [#allocation8], %s214
        %v217 = vld [vmem:[%s185] sm:$0xff]
        %v218 = vld [vmem:[%s185 + $0x8] sm:$0xff]
        %v219 = vld [vmem:[#allocation5] sm:$0xff]
        %v220 = vld [vmem:[#allocation5 + $0x8] sm:$0xff]
        %v221 = vld [vmem:[#allocation5 + $0x10] sm:$0xff]
        %v222 = vld [vmem:[#allocation5 + $0x18] sm:$0xff]
        %v223 = vld [vmem:[#allocation5 + $0x20] sm:$0xff]
        %v224 = vld [vmem:[#allocation5 + $0x28] sm:$0xff]
        %v225 = vld [vmem:[#allocation5 + $0x30] sm:$0xff]
        %v226 = vld [vmem:[#allocation5 + $0x38] sm:$0xff]
        %v227 = vld [vmem:[#allocation5 + $0x40] sm:$0xff]
        %v228 = vld [vmem:[#allocation5 + $0x48] sm:$0xff]
        %v229 = vld [vmem:[#allocation5 + $0x50] sm:$0xff]
        %v230 = vld [vmem:[#allocation5 + $0x58] sm:$0xff]
        %v231 = vld [vmem:[#allocation5 + $0x60] sm:$0xff]
        %v232 = vld [vmem:[#allocation5 + $0x68] sm:$0xff]
        %v233 = vld [vmem:[#allocation5 + $0x70] sm:$0xff]
        %v234 = vld [vmem:[#allocation5 + $0x78] sm:$0xff]
        %v235 = vld [vmem:[#allocation5 + $0x80] sm:$0xff]
        %v236 = vld [vmem:[#allocation5 + $0x88] sm:$0xff]
        %v237 = vld [vmem:[#allocation5 + $0x90] sm:$0xff]
        %v238 = vld [vmem:[#allocation5 + $0x98] sm:$0xff]
        %v239 = vld [vmem:[#allocation5 + $0xa0] sm:$0xff]
        %v240 = vld [vmem:[#allocation5 + $0xa8] sm:$0xff]
        %v241 = vld [vmem:[#allocation5 + $0xb0] sm:$0xff]
        %v242 = vld [vmem:[#allocation5 + $0xb8] sm:$0xff]
        %v243 = vld [vmem:[#allocation5 + $0xc0] sm:$0xff]
        %v244 = vld [vmem:[#allocation5 + $0xc8] sm:$0xff]
        %v245 = vld [vmem:[#allocation5 + $0xd0] sm:$0xff]
        %v246 = vld [vmem:[#allocation5 + $0xd8] sm:$0xff]
        %v247 = vld [vmem:[#allocation5 + $0xe0] sm:$0xff]
        %v248 = vld [vmem:[#allocation5 + $0xe8] sm:$0xff]
        %v249 = vld [vmem:[#allocation5 + $0xf0] sm:$0xff]
        %v250 = vld [vmem:[#allocation5 + $0xf8] sm:$0xff]
        %v251 = vld [vmem:[#allocation5 + $0x100] sm:$0xff]
        %v252 = vld [vmem:[#allocation5 + $0x108] sm:$0xff]
        %v253 = vld [vmem:[#allocation5 + $0x110] sm:$0xff]
        %v254 = vld [vmem:[#allocation5 + $0x118] sm:$0xff]
        %v255 = vld [vmem:[#allocation5 + $0x120] sm:$0xff]
        %v256 = vld [vmem:[#allocation5 + $0x128] sm:$0xff]
        %v257 = vld [vmem:[#allocation5 + $0x130] sm:$0xff]
        %v258 = vld [vmem:[#allocation5 + $0x138] sm:$0xff]
        %v259 = vld [vmem:[#allocation5 + $0x140] sm:$0xff]
        %v260 = vld [vmem:[#allocation5 + $0x148] sm:$0xff]
        %v261 = vld [vmem:[#allocation5 + $0x150] sm:$0xff]
        %v262 = vld [vmem:[#allocation5 + $0x158] sm:$0xff]
        %v263 = vld [vmem:[#allocation5 + $0x160] sm:$0xff]
        %v264 = vld [vmem:[#allocation5 + $0x168] sm:$0xff]
        %v265 = vld [vmem:[#allocation5 + $0x170] sm:$0xff]
        %v266 = vld [vmem:[#allocation5 + $0x178] sm:$0xff]
        %v267 = vld [vmem:[#allocation5 + $0x180] sm:$0xff]
        %v268 = vld [vmem:[#allocation5 + $0x188] sm:$0xff]
        %v269 = vld [vmem:[#allocation5 + $0x190] sm:$0xff]
        %v270 = vld [vmem:[#allocation5 + $0x198] sm:$0xff]
        %v271 = vld [vmem:[#allocation5 + $0x1a0] sm:$0xff]
        %v272 = vld [vmem:[#allocation5 + $0x1a8] sm:$0xff]
        %v273 = vld [vmem:[#allocation5 + $0x1b0] sm:$0xff]
        %v274 = vld [vmem:[#allocation5 + $0x1b8] sm:$0xff]
        %v275 = vld [vmem:[#allocation5 + $0x1c0] sm:$0xff]
        %v276 = vld [vmem:[#allocation5 + $0x1c8] sm:$0xff]
        %v277 = vld [vmem:[#allocation5 + $0x1d0] sm:$0xff]
        %v278 = vld [vmem:[#allocation5 + $0x1d8] sm:$0xff]
        %v279 = vld [vmem:[#allocation5 + $0x1e0] sm:$0xff]
        %v280 = vld [vmem:[#allocation5 + $0x1e8] sm:$0xff]
        %v281 = vld [vmem:[#allocation5 + $0x1f0] sm:$0xff]
        %v282 = vld [vmem:[#allocation5 + $0x1f8] sm:$0xff]
        %v283 = vld [vmem:[#allocation5 + $0x200] sm:$0xff]
        %v284 = vld [vmem:[#allocation5 + $0x208] sm:$0xff]
        %v285 = vld [vmem:[#allocation5 + $0x210] sm:$0xff]
        %v286 = vld [vmem:[#allocation5 + $0x218] sm:$0xff]
        %v287 = vld [vmem:[#allocation5 + $0x220] sm:$0xff]
        %v288 = vld [vmem:[#allocation5 + $0x228] sm:$0xff]
        %v289 = vld [vmem:[#allocation5 + $0x230] sm:$0xff]
        %v290 = vld [vmem:[#allocation5 + $0x238] sm:$0xff]
        %v291 = vld [vmem:[#allocation5 + $0x240] sm:$0xff]
        %v292 = vld [vmem:[#allocation5 + $0x248] sm:$0xff]
        %v293 = vld [vmem:[#allocation5 + $0x250] sm:$0xff]
        %v294 = vld [vmem:[#allocation5 + $0x258] sm:$0xff]
        %v295 = vld [vmem:[#allocation5 + $0x260] sm:$0xff]
        %v296 = vld [vmem:[#allocation5 + $0x268] sm:$0xff]
        %v297 = vld [vmem:[#allocation5 + $0x270] sm:$0xff]
        %v298 = vld [vmem:[#allocation5 + $0x278] sm:$0xff]
        %v299 = vld [vmem:[#allocation5 + $0x280] sm:$0xff]
        %v300 = vld [vmem:[#allocation5 + $0x288] sm:$0xff]
        %v301 = vld [vmem:[#allocation5 + $0x290] sm:$0xff]
        %v302 = vld [vmem:[#allocation5 + $0x298] sm:$0xff]
        %v303 = vld [vmem:[#allocation5 + $0x2a0] sm:$0xff]
        %v304 = vld [vmem:[#allocation5 + $0x2a8] sm:$0xff]
        %v305 = vld [vmem:[#allocation5 + $0x2b0] sm:$0xff]
        %v306 = vld [vmem:[#allocation5 + $0x2b8] sm:$0xff]
        %v307 = vld [vmem:[#allocation5 + $0x2c0] sm:$0xff]
        %v308 = vld [vmem:[#allocation5 + $0x2c8] sm:$0xff]
        %v309 = vld [vmem:[#allocation5 + $0x2d0] sm:$0xff]
        %v310 = vld [vmem:[#allocation5 + $0x2d8] sm:$0xff]
        %v311 = vld [vmem:[#allocation5 + $0x2e0] sm:$0xff]
        %v312 = vld [vmem:[#allocation5 + $0x2e8] sm:$0xff]
        %v313 = vld [vmem:[#allocation5 + $0x2f0] sm:$0xff]
        %v314 = vld [vmem:[#allocation5 + $0x2f8] sm:$0xff]
        %v315 = vld [vmem:[#allocation5 + $0x300] sm:$0xff]
        %v316 = vld [vmem:[#allocation5 + $0x308] sm:$0xff]
        %v317 = vld [vmem:[#allocation5 + $0x310] sm:$0xff]
        %v318 = vld [vmem:[#allocation5 + $0x318] sm:$0xff]
        %v321 = vunpack.c.l.b16 %v217
        %v322 = vunpack.c.h.b16 %v217
        %v323 = vunpack.c.l.b16 %v218
        %v324 = vunpack.c.h.b16 %v218
        %v325 = vpack.c.b16 %v321, %v321
        %v326 = vpack.c.b16 %v322, %v322
        %v327 = vpack.c.b16 %v323, %v323
        %v328 = vpack.c.b16 %v324, %v324
        %v432 = vunpack.c.l.b16 %v219
        %v433 = vunpack.c.h.b16 %v219
        %v434 = vunpack.c.l.b16 %v220
        %v435 = vunpack.c.h.b16 %v220
        %v436 = vunpack.c.l.b16 %v221
        %v437 = vunpack.c.h.b16 %v221
        %v438 = vunpack.c.l.b16 %v222
        %v439 = vunpack.c.h.b16 %v222
        %v440 = vunpack.c.l.b16 %v223
        %v441 = vunpack.c.h.b16 %v223
        %v442 = vunpack.c.l.b16 %v224
        %v443 = vunpack.c.h.b16 %v224
        %v444 = vunpack.c.l.b16 %v225
        %v445 = vunpack.c.h.b16 %v225
        %v446 = vunpack.c.l.b16 %v226
        %v447 = vunpack.c.h.b16 %v226
        %v448 = vunpack.c.l.b16 %v227
        %v449 = vunpack.c.h.b16 %v227
        %v450 = vunpack.c.l.b16 %v228
        %v451 = vunpack.c.h.b16 %v228
        %v452 = vunpack.c.l.b16 %v229
        %v453 = vunpack.c.h.b16 %v229
        %v454 = vunpack.c.l.b16 %v230
        %v455 = vunpack.c.h.b16 %v230
        %v456 = vunpack.c.l.b16 %v231
        %v457 = vunpack.c.h.b16 %v231
        %v458 = vunpack.c.l.b16 %v232
        %v459 = vunpack.c.h.b16 %v232
        %v460 = vunpack.c.l.b16 %v233
        %v461 = vunpack.c.h.b16 %v233
        %v462 = vunpack.c.l.b16 %v234
        %v463 = vunpack.c.h.b16 %v234
        %v464 = vunpack.c.l.b16 %v235
        %v465 = vunpack.c.h.b16 %v235
        %v466 = vunpack.c.l.b16 %v236
        %v467 = vunpack.c.h.b16 %v236
        %v468 = vunpack.c.l.b16 %v237
        %v469 = vunpack.c.h.b16 %v237
        %v470 = vunpack.c.l.b16 %v238
        %v471 = vunpack.c.h.b16 %v238
        %v472 = vunpack.c.l.b16 %v239
        %v473 = vunpack.c.h.b16 %v239
        %v474 = vunpack.c.l.b16 %v240
        %v475 = vunpack.c.h.b16 %v240
        %v476 = vunpack.c.l.b16 %v241
        %v477 = vunpack.c.h.b16 %v241
        %v478 = vunpack.c.l.b16 %v242
        %v479 = vunpack.c.h.b16 %v242
        %v480 = vunpack.c.l.b16 %v243
        %v481 = vunpack.c.h.b16 %v243
        %v482 = vunpack.c.l.b16 %v244
        %v483 = vunpack.c.h.b16 %v244
        %v484 = vunpack.c.l.b16 %v245
        %v485 = vunpack.c.h.b16 %v245
        %v486 = vunpack.c.l.b16 %v246
        %v487 = vunpack.c.h.b16 %v246
        %v488 = vunpack.c.l.b16 %v247
        %v489 = vunpack.c.h.b16 %v247
        %v490 = vunpack.c.l.b16 %v248
        %v491 = vunpack.c.h.b16 %v248
        %v492 = vunpack.c.l.b16 %v249
        %v493 = vunpack.c.h.b16 %v249
        %v494 = vunpack.c.l.b16 %v250
        %v495 = vunpack.c.h.b16 %v250
        %v496 = vunpack.c.l.b16 %v251
        %v497 = vunpack.c.h.b16 %v251
        %v498 = vunpack.c.l.b16 %v252
        %v499 = vunpack.c.h.b16 %v252
        %v500 = vunpack.c.l.b16 %v253
        %v501 = vunpack.c.h.b16 %v253
        %v502 = vunpack.c.l.b16 %v254
        %v503 = vunpack.c.h.b16 %v254
        %v504 = vunpack.c.l.b16 %v255
        %v505 = vunpack.c.h.b16 %v255
        %v506 = vunpack.c.l.b16 %v256
        %v507 = vunpack.c.h.b16 %v256
        %v508 = vunpack.c.l.b16 %v257
        %v509 = vunpack.c.h.b16 %v257
        %v510 = vunpack.c.l.b16 %v258
        %v511 = vunpack.c.h.b16 %v258
        %v512 = vunpack.c.l.b16 %v259
        %v513 = vunpack.c.h.b16 %v259
        %v514 = vunpack.c.l.b16 %v260
        %v515 = vunpack.c.h.b16 %v260
        %v516 = vunpack.c.l.b16 %v261
        %v517 = vunpack.c.h.b16 %v261
        %v518 = vunpack.c.l.b16 %v262
        %v519 = vunpack.c.h.b16 %v262
        %v520 = vunpack.c.l.b16 %v263
        %v521 = vunpack.c.h.b16 %v263
        %v522 = vunpack.c.l.b16 %v264
        %v523 = vunpack.c.h.b16 %v264
        %v524 = vunpack.c.l.b16 %v265
        %v525 = vunpack.c.h.b16 %v265
        %v526 = vunpack.c.l.b16 %v266
        %v527 = vunpack.c.h.b16 %v266
        %v528 = vunpack.c.l.b16 %v267
        %v529 = vunpack.c.h.b16 %v267
        %v530 = vunpack.c.l.b16 %v268
        %v531 = vunpack.c.h.b16 %v268
        %v532 = vunpack.c.l.b16 %v269
        %v533 = vunpack.c.h.b16 %v269
        %v534 = vunpack.c.l.b16 %v270
        %v535 = vunpack.c.h.b16 %v270
        %v536 = vunpack.c.l.b16 %v271
        %v537 = vunpack.c.h.b16 %v271
        %v538 = vunpack.c.l.b16 %v272
        %v539 = vunpack.c.h.b16 %v272
        %v540 = vunpack.c.l.b16 %v273
        %v541 = vunpack.c.h.b16 %v273
        %v542 = vunpack.c.l.b16 %v274
        %v543 = vunpack.c.h.b16 %v274
        %v544 = vunpack.c.l.b16 %v275
        %v545 = vunpack.c.h.b16 %v275
        %v546 = vunpack.c.l.b16 %v276
        %v547 = vunpack.c.h.b16 %v276
        %v548 = vunpack.c.l.b16 %v277
        %v549 = vunpack.c.h.b16 %v277
        %v550 = vunpack.c.l.b16 %v278
        %v551 = vunpack.c.h.b16 %v278
        %v552 = vunpack.c.l.b16 %v279
        %v553 = vunpack.c.h.b16 %v279
        %v554 = vunpack.c.l.b16 %v280
        %v555 = vunpack.c.h.b16 %v280
        %v556 = vunpack.c.l.b16 %v281
        %v557 = vunpack.c.h.b16 %v281
        %v558 = vunpack.c.l.b16 %v282
        %v559 = vunpack.c.h.b16 %v282
        %v560 = vunpack.c.l.b16 %v283
        %v561 = vunpack.c.h.b16 %v283
        %v562 = vunpack.c.l.b16 %v284
        %v563 = vunpack.c.h.b16 %v284
        %v564 = vunpack.c.l.b16 %v285
        %v565 = vunpack.c.h.b16 %v285
        %v566 = vunpack.c.l.b16 %v286
        %v567 = vunpack.c.h.b16 %v286
        %v568 = vunpack.c.l.b16 %v287
        %v569 = vunpack.c.h.b16 %v287
        %v570 = vunpack.c.l.b16 %v288
        %v571 = vunpack.c.h.b16 %v288
        %v572 = vunpack.c.l.b16 %v289
        %v573 = vunpack.c.h.b16 %v289
        %v574 = vunpack.c.l.b16 %v290
        %v575 = vunpack.c.h.b16 %v290
        %v576 = vunpack.c.l.b16 %v291
        %v577 = vunpack.c.h.b16 %v291
        %v578 = vunpack.c.l.b16 %v292
        %v579 = vunpack.c.h.b16 %v292
        %v580 = vunpack.c.l.b16 %v293
        %v581 = vunpack.c.h.b16 %v293
        %v582 = vunpack.c.l.b16 %v294
        %v583 = vunpack.c.h.b16 %v294
        %v584 = vunpack.c.l.b16 %v295
        %v585 = vunpack.c.h.b16 %v295
        %v586 = vunpack.c.l.b16 %v296
        %v587 = vunpack.c.h.b16 %v296
        %v588 = vunpack.c.l.b16 %v297
        %v589 = vunpack.c.h.b16 %v297
        %v590 = vunpack.c.l.b16 %v298
        %v591 = vunpack.c.h.b16 %v298
        %v592 = vunpack.c.l.b16 %v299
        %v593 = vunpack.c.h.b16 %v299
        %v594 = vunpack.c.l.b16 %v300
        %v595 = vunpack.c.h.b16 %v300
        %v596 = vunpack.c.l.b16 %v301
        %v597 = vunpack.c.h.b16 %v301
        %v598 = vunpack.c.l.b16 %v302
        %v599 = vunpack.c.h.b16 %v302
        %v600 = vunpack.c.l.b16 %v303
        %v601 = vunpack.c.h.b16 %v303
        %v602 = vunpack.c.l.b16 %v304
        %v603 = vunpack.c.h.b16 %v304
        %v604 = vunpack.c.l.b16 %v305
        %v605 = vunpack.c.h.b16 %v305
        %v606 = vunpack.c.l.b16 %v306
        %v607 = vunpack.c.h.b16 %v306
        %v608 = vunpack.c.l.b16 %v307
        %v609 = vunpack.c.h.b16 %v307
        %v610 = vunpack.c.l.b16 %v308
        %v611 = vunpack.c.h.b16 %v308
        %v612 = vunpack.c.l.b16 %v309
        %v613 = vunpack.c.h.b16 %v309
        %v614 = vunpack.c.l.b16 %v310
        %v615 = vunpack.c.h.b16 %v310
        %v616 = vunpack.c.l.b16 %v311
        %v617 = vunpack.c.h.b16 %v311
        %v618 = vunpack.c.l.b16 %v312
        %v619 = vunpack.c.h.b16 %v312
        %v620 = vunpack.c.l.b16 %v313
        %v621 = vunpack.c.h.b16 %v313
        %v622 = vunpack.c.l.b16 %v314
        %v623 = vunpack.c.h.b16 %v314
        %v624 = vunpack.c.l.b16 %v315
        %v625 = vunpack.c.h.b16 %v315
        %v626 = vunpack.c.l.b16 %v316
        %v627 = vunpack.c.h.b16 %v316
        %v628 = vunpack.c.l.b16 %v317
        %v629 = vunpack.c.h.b16 %v317
        %v630 = vunpack.c.l.b16 %v318
        %v631 = vunpack.c.h.b16 %v318
        %v632 = vpack.c.b16 %v436, %v432
        %v633 = vpack.c.b16 %v437, %v433
        %v634 = vpack.c.b16 %v438, %v434
        %v635 = vpack.c.b16 %v439, %v435
        %v636 = vpack.c.b16 %v444, %v440
        %v637 = vpack.c.b16 %v445, %v441
        %v638 = vpack.c.b16 %v446, %v442
        %v639 = vpack.c.b16 %v447, %v443
        %v640 = vpack.c.b16 %v452, %v448
        %v641 = vpack.c.b16 %v453, %v449
        %v642 = vpack.c.b16 %v454, %v450
        %v643 = vpack.c.b16 %v455, %v451
        %v644 = vpack.c.b16 %v460, %v456
        %v645 = vpack.c.b16 %v461, %v457
        %v646 = vpack.c.b16 %v462, %v458
        %v647 = vpack.c.b16 %v463, %v459
        %v648 = vpack.c.b16 %v468, %v464
        %v649 = vpack.c.b16 %v469, %v465
        %v650 = vpack.c.b16 %v470, %v466
        %v651 = vpack.c.b16 %v471, %v467
        %v652 = vpack.c.b16 %v476, %v472
        %v653 = vpack.c.b16 %v477, %v473
        %v654 = vpack.c.b16 %v478, %v474
        %v655 = vpack.c.b16 %v479, %v475
        %v656 = vpack.c.b16 %v484, %v480
        %v657 = vpack.c.b16 %v485, %v481
        %v658 = vpack.c.b16 %v486, %v482
        %v659 = vpack.c.b16 %v487, %v483
        %v660 = vpack.c.b16 %v492, %v488
        %v661 = vpack.c.b16 %v493, %v489
        %v662 = vpack.c.b16 %v494, %v490
        %v663 = vpack.c.b16 %v495, %v491
        %v664 = vpack.c.b16 %v500, %v496
        %v665 = vpack.c.b16 %v501, %v497
        %v666 = vpack.c.b16 %v502, %v498
        %v667 = vpack.c.b16 %v503, %v499
        %v668 = vpack.c.b16 %v508, %v504
        %v669 = vpack.c.b16 %v509, %v505
        %v670 = vpack.c.b16 %v510, %v506
        %v671 = vpack.c.b16 %v511, %v507
        %v672 = vpack.c.b16 %v516, %v512
        %v673 = vpack.c.b16 %v517, %v513
        %v674 = vpack.c.b16 %v518, %v514
        %v675 = vpack.c.b16 %v519, %v515
        %v676 = vpack.c.b16 %v524, %v520
        %v677 = vpack.c.b16 %v525, %v521
        %v678 = vpack.c.b16 %v526, %v522
        %v679 = vpack.c.b16 %v527, %v523
        %v680 = vpack.c.b16 %v532, %v528
        %v681 = vpack.c.b16 %v533, %v529
        %v682 = vpack.c.b16 %v534, %v530
        %v683 = vpack.c.b16 %v535, %v531
        %v684 = vpack.c.b16 %v540, %v536
        %v685 = vpack.c.b16 %v541, %v537
        %v686 = vpack.c.b16 %v542, %v538
        %v687 = vpack.c.b16 %v543, %v539
        %v688 = vpack.c.b16 %v548, %v544
        %v689 = vpack.c.b16 %v549, %v545
        %v690 = vpack.c.b16 %v550, %v546
        %v691 = vpack.c.b16 %v551, %v547
        %v692 = vpack.c.b16 %v556, %v552
        %v693 = vpack.c.b16 %v557, %v553
        %v694 = vpack.c.b16 %v558, %v554
        %v695 = vpack.c.b16 %v559, %v555
        %v696 = vpack.c.b16 %v564, %v560
        %v697 = vpack.c.b16 %v565, %v561
        %v698 = vpack.c.b16 %v566, %v562
        %v699 = vpack.c.b16 %v567, %v563
        %v700 = vpack.c.b16 %v572, %v568
        %v701 = vpack.c.b16 %v573, %v569
        %v702 = vpack.c.b16 %v574, %v570
        %v703 = vpack.c.b16 %v575, %v571
        %v704 = vpack.c.b16 %v580, %v576
        %v705 = vpack.c.b16 %v581, %v577
        %v706 = vpack.c.b16 %v582, %v578
        %v707 = vpack.c.b16 %v583, %v579
        %v708 = vpack.c.b16 %v588, %v584
        %v709 = vpack.c.b16 %v589, %v585
        %v710 = vpack.c.b16 %v590, %v586
        %v711 = vpack.c.b16 %v591, %v587
        %v712 = vpack.c.b16 %v596, %v592
        %v713 = vpack.c.b16 %v597, %v593
        %v714 = vpack.c.b16 %v598, %v594
        %v715 = vpack.c.b16 %v599, %v595
        %v716 = vpack.c.b16 %v604, %v600
        %v717 = vpack.c.b16 %v605, %v601
        %v718 = vpack.c.b16 %v606, %v602
        %v719 = vpack.c.b16 %v607, %v603
        %v720 = vpack.c.b16 %v612, %v608
        %v721 = vpack.c.b16 %v613, %v609
        %v722 = vpack.c.b16 %v614, %v610
        %v723 = vpack.c.b16 %v615, %v611
        %v724 = vpack.c.b16 %v620, %v616
        %v725 = vpack.c.b16 %v621, %v617
        %v726 = vpack.c.b16 %v622, %v618
        %v727 = vpack.c.b16 %v623, %v619
        %v728 = vpack.c.b16 %v628, %v624
        %v729 = vpack.c.b16 %v629, %v625
        %v730 = vpack.c.b16 %v630, %v626
        %v731 = vpack.c.b16 %v631, %v627
        %vm832 = vcmask 130048
        %v834 = vsel %vm832, %v328, 0
        %836 = vmatprep.subr.bf16.mxu0 %v633
        %837 = vmatpush1.bf16.msra.mxu0 %v632
        %838 = vmatprep.subr.bf16.mxu0 %v637
        %839 = vmatpush1.bf16.msra.mxu0 %v636
        %840 = vmatprep.subr.bf16.mxu0 %v641
        %841 = vmatpush1.bf16.msra.mxu0 %v640
        %842 = vmatprep.subr.bf16.mxu0 %v645
        %843 = vmatpush1.bf16.msra.mxu0 %v644
        %844 = vmatprep.subr.bf16.mxu0 %v649
        %845 = vmatpush1.bf16.msra.mxu0 %v648
        %846 = vmatprep.subr.bf16.mxu0 %v653
        %847 = vmatpush1.bf16.msra.mxu0 %v652
        %848 = vmatprep.subr.bf16.mxu0 %v657
        %849 = vmatpush1.bf16.msra.mxu0 %v656
        %850 = vmatprep.subr.bf16.mxu0 %v661
        %851 = vmatpush1.bf16.msra.mxu0 %v660
        %852 = vmatprep.subr.bf16.mxu0 %v665
        %853 = vmatpush1.bf16.msra.mxu0 %v664
        %854 = vmatprep.subr.bf16.mxu0 %v669
        %855 = vmatpush1.bf16.msra.mxu0 %v668
        %856 = vmatprep.subr.bf16.mxu0 %v673
        %857 = vmatpush1.bf16.msra.mxu0 %v672
        %858 = vmatprep.subr.bf16.mxu0 %v677
        %859 = vmatpush1.bf16.msra.mxu0 %v676
        %860 = vmatprep.subr.bf16.mxu0 %v681
        %861 = vmatpush1.bf16.msra.mxu0 %v680
        %862 = vmatprep.subr.bf16.mxu0 %v685
        %863 = vmatpush1.bf16.msra.mxu0 %v684
        %864 = vmatprep.subr.bf16.mxu0 %v689
        %865 = vmatpush1.bf16.msra.mxu0 %v688
        %866 = vmatprep.subr.bf16.mxu0 %v693
        %867 = vmatpush1.bf16.msra.mxu0 %v692
        %868 = vmatprep.mubr.bf16.mxu0 %v326
        %869 = vmatmul.mubr.bf16.gmra.mrb[0].mxu0 %v325
        %v870 = vpop.f32.mrb[0].mxu0
        %v871 = vadd.f32 0.0, %v870
        %v872 = vpop.f32.mrb[0].mxu0
        %v873 = vadd.f32 0.0, %v872
        %v874 = vpop.f32.mrb[0].mxu0
        %v875 = vpop.f32.mrb[0].mxu0
        %876 = vdwg.mxu0
        %877 = vmatprep.subr.bf16.mxu0 %v697
        %878 = vmatpush1.bf16.msra.mxu0 %v696
        %879 = vmatprep.subr.bf16.mxu0 %v701
        %880 = vmatpush1.bf16.msra.mxu0 %v700
        %881 = vmatprep.subr.bf16.mxu0 %v705
        %882 = vmatpush1.bf16.msra.mxu0 %v704
        %883 = vmatprep.subr.bf16.mxu0 %v709
        %884 = vmatpush1.bf16.msra.mxu0 %v708
        %885 = vmatprep.subr.bf16.mxu0 %v713
        %886 = vmatpush1.bf16.msra.mxu0 %v712
        %887 = vmatprep.subr.bf16.mxu0 %v717
        %888 = vmatpush1.bf16.msra.mxu0 %v716
        %889 = vmatprep.subr.bf16.mxu0 %v721
        %890 = vmatpush1.bf16.msra.mxu0 %v720
        %891 = vmatprep.subr.bf16.mxu0 %v725
        %892 = vmatpush1.bf16.msra.mxu0 %v724
        %893 = vmatprep.subr.bf16.mxu0 %v729
        %894 = vmatpush1.bf16.msra.mxu0 %v728
        %895 = vmatprep.subr.bf16.mxu0 0
        %896 = vmatpush1.bf16.msra.mxu0 0
        %897 = vmatprep.subr.bf16.mxu0 0
        %898 = vmatpush1.bf16.msra.mxu0 0
        %899 = vmatprep.subr.bf16.mxu0 0
        %900 = vmatpush1.bf16.msra.mxu0 0
        %901 = vmatprep.subr.bf16.mxu0 0
        %902 = vmatpush1.bf16.msra.mxu0 0
        %903 = vmatprep.subr.bf16.mxu0 0
        %904 = vmatpush1.bf16.msra.mxu0 0
        %905 = vmatprep.subr.bf16.mxu0 0
        %906 = vmatpush1.bf16.msra.mxu0 0
        %907 = vmatprep.subr.bf16.mxu0 0
        %908 = vmatpush1.bf16.msra.mxu0 0
        %909 = vmatprep.mubr.bf16.mxu0 %v834
        %910 = vmatmul.mubr.bf16.gmra.mrb[0].mxu0 %v327
        %v911 = vpop.f32.mrb[0].mxu0
        %v912 = vadd.f32 %v871, %v911
        %v913 = vpop.f32.mrb[0].mxu0
        %v914 = vadd.f32 %v873, %v913
        %v915 = vpop.f32.mrb[0].mxu0
        %v916 = vpop.f32.mrb[0].mxu0
        %917 = vdwg.mxu0
        %918 = vmatprep.subr.bf16.mxu0 %v635
        %919 = vmatpush1.bf16.msra.mxu0 %v634
        %920 = vmatprep.subr.bf16.mxu0 %v639
        %921 = vmatpush1.bf16.msra.mxu0 %v638
        %922 = vmatprep.subr.bf16.mxu0 %v643
        %923 = vmatpush1.bf16.msra.mxu0 %v642
        %924 = vmatprep.subr.bf16.mxu0 %v647
        %925 = vmatpush1.bf16.msra.mxu0 %v646
        %926 = vmatprep.subr.bf16.mxu0 %v651
        %927 = vmatpush1.bf16.msra.mxu0 %v650
        %928 = vmatprep.subr.bf16.mxu0 %v655
        %929 = vmatpush1.bf16.msra.mxu0 %v654
        %930 = vmatprep.subr.bf16.mxu0 %v659
        %931 = vmatpush1.bf16.msra.mxu0 %v658
        %932 = vmatprep.subr.bf16.mxu0 %v663
        %933 = vmatpush1.bf16.msra.mxu0 %v662
        %934 = vmatprep.subr.bf16.mxu0 %v667
        %935 = vmatpush1.bf16.msra.mxu0 %v666
        %936 = vmatprep.subr.bf16.mxu0 %v671
        %937 = vmatpush1.bf16.msra.mxu0 %v670
        %938 = vmatprep.subr.bf16.mxu0 %v675
        %939 = vmatpush1.bf16.msra.mxu0 %v674
        %940 = vmatprep.subr.bf16.mxu0 %v679
        %941 = vmatpush1.bf16.msra.mxu0 %v678
        %942 = vmatprep.subr.bf16.mxu0 %v683
        %943 = vmatpush1.bf16.msra.mxu0 %v682
        %944 = vmatprep.subr.bf16.mxu0 %v687
        %945 = vmatpush1.bf16.msra.mxu0 %v686
        %946 = vmatprep.subr.bf16.mxu0 %v691
        %947 = vmatpush1.bf16.msra.mxu0 %v690
        %948 = vmatprep.subr.bf16.mxu0 %v695
        %949 = vmatpush1.bf16.msra.mxu0 %v694
        %950 = vmatprep.mubr.bf16.mxu0 %v326
        %951 = vmatmul.mubr.bf16.gmra.mrb[0].mxu0 %v325
        %v952 = vpop.f32.mrb[0].mxu0
        %v953 = vadd.f32 0.0, %v952
        %v954 = vpop.f32.mrb[0].mxu0
        %v955 = vadd.f32 0.0, %v954
        %v956 = vpop.f32.mrb[0].mxu0
        %v957 = vpop.f32.mrb[0].mxu0
        %958 = vdwg.mxu0
        %959 = vmatprep.subr.bf16.mxu0 %v699
        %960 = vmatpush1.bf16.msra.mxu0 %v698
        %961 = vmatprep.subr.bf16.mxu0 %v703
        %962 = vmatpush1.bf16.msra.mxu0 %v702
        %963 = vmatprep.subr.bf16.mxu0 %v707
        %964 = vmatpush1.bf16.msra.mxu0 %v706
        %965 = vmatprep.subr.bf16.mxu0 %v711
        %966 = vmatpush1.bf16.msra.mxu0 %v710
        %967 = vmatprep.subr.bf16.mxu0 %v715
        %968 = vmatpush1.bf16.msra.mxu0 %v714
        %969 = vmatprep.subr.bf16.mxu0 %v719
        %970 = vmatpush1.bf16.msra.mxu0 %v718
        %971 = vmatprep.subr.bf16.mxu0 %v723
        %972 = vmatpush1.bf16.msra.mxu0 %v722
        %973 = vmatprep.subr.bf16.mxu0 %v727
        %974 = vmatpush1.bf16.msra.mxu0 %v726
        %975 = vmatprep.subr.bf16.mxu0 %v731
        %976 = vmatpush1.bf16.msra.mxu0 %v730
        %977 = vmatprep.subr.bf16.mxu0 0
        %978 = vmatpush1.bf16.msra.mxu0 0
        %979 = vmatprep.subr.bf16.mxu0 0
        %980 = vmatpush1.bf16.msra.mxu0 0
        %981 = vmatprep.subr.bf16.mxu0 0
        %982 = vmatpush1.bf16.msra.mxu0 0
        %983 = vmatprep.subr.bf16.mxu0 0
        %984 = vmatpush1.bf16.msra.mxu0 0
        %985 = vmatprep.subr.bf16.mxu0 0
        %986 = vmatpush1.bf16.msra.mxu0 0
        %987 = vmatprep.subr.bf16.mxu0 0
        %988 = vmatpush1.bf16.msra.mxu0 0
        %989 = vmatprep.subr.bf16.mxu0 0
        %990 = vmatpush1.bf16.msra.mxu0 0
        %991 = vmatprep.mubr.bf16.mxu0 %v834
        %992 = vmatmul.mubr.bf16.gmra.mrb[0].mxu0 %v327
        %v993 = vpop.f32.mrb[0].mxu0
        %v994 = vadd.f32 %v953, %v993
        %v995 = vpop.f32.mrb[0].mxu0
        %v996 = vadd.f32 %v955, %v995
        %v997 = vpop.f32.mrb[0].mxu0
        %v998 = vpop.f32.mrb[0].mxu0
        %999 = vdwg.mxu0
        %v1000 = vmul.f32 %v912, %v912
        %v1001 = vmul.f32 %v914, %v914
        %v1002 = vmul.f32 %v994, %v994
        %v1003 = vmul.f32 %v996, %v996
        %v1004 = vpack.c.bf16 %v1000, %v1000
        %v1005 = vpack.c.bf16 %v1001, %v1001
        %v1006 = vpack.c.bf16 %v1002, %v1002
        %v1007 = vpack.c.bf16 %v1003, %v1003
        %v1008 = vld [vmem:[#allocation7] sm:$0xf]
        %v1009 = vld [vmem:[#allocation7 + $0x4] sm:$0xf]
        %v1010 = vld [vmem:[#allocation7 + $0x8] sm:$0xf]
        %v1011 = vld [vmem:[#allocation7 + $0xc] sm:$0xf]
        %v1012 = vld [vmem:[#allocation7 + $0x10] sm:$0xf]
        %v1013 = vld [vmem:[#allocation7 + $0x14] sm:$0xf]
        %v1014 = vld [vmem:[#allocation7 + $0x18] sm:$0xf]
        %v1015 = vld [vmem:[#allocation7 + $0x1c] sm:$0xf]
        %v1016 = vld [vmem:[#allocation7 + $0x20] sm:$0xf]
        %v1017 = vld [vmem:[#allocation7 + $0x24] sm:$0xf]
        %v1018 = vld [vmem:[#allocation7 + $0x28] sm:$0xf]
        %v1019 = vld [vmem:[#allocation7 + $0x2c] sm:$0xf]
        %v1020 = vld [vmem:[#allocation7 + $0x30] sm:$0xf]
        %v1021 = vld [vmem:[#allocation7 + $0x34] sm:$0xf]
        %v1022 = vld [vmem:[#allocation7 + $0x38] sm:$0xf]
        %v1023 = vld [vmem:[#allocation7 + $0x3c] sm:$0xf]
        %v1024 = vld [vmem:[#allocation7 + $0x40] sm:$0xf]
        %v1025 = vld [vmem:[#allocation7 + $0x44] sm:$0xf]
        %v1026 = vld [vmem:[#allocation7 + $0x48] sm:$0xf]
        %v1027 = vld [vmem:[#allocation7 + $0x4c] sm:$0xf]
        %v1028 = vld [vmem:[#allocation7 + $0x50] sm:$0xf]
        %v1029 = vld [vmem:[#allocation7 + $0x54] sm:$0xf]
        %v1030 = vld [vmem:[#allocation7 + $0x58] sm:$0xf]
        %v1031 = vld [vmem:[#allocation7 + $0x5c] sm:$0xf]
        %v1032 = vld [vmem:[#allocation7 + $0x60] sm:$0xf]
        %v1033 = vld [vmem:[#allocation7 + $0x64] sm:$0xf]
        %v1034 = vld [vmem:[#allocation7 + $0x68] sm:$0xf]
        %v1035 = vld [vmem:[#allocation7 + $0x6c] sm:$0xf]
        %v1036 = vld [vmem:[#allocation7 + $0x70] sm:$0xf]
        %v1037 = vld [vmem:[#allocation7 + $0x74] sm:$0xf]
        %v1038 = vld [vmem:[#allocation7 + $0x78] sm:$0xf]
        %v1039 = vld [vmem:[#allocation7 + $0x7c] sm:$0xf]
        %v1040 = vld [vmem:[#allocation7 + $0x80] sm:$0xf]
        %v1041 = vld [vmem:[#allocation7 + $0x84] sm:$0xf]
        %v1042 = vld [vmem:[#allocation7 + $0x88] sm:$0xf]
        %v1043 = vld [vmem:[#allocation7 + $0x8c] sm:$0xf]
        %v1044 = vld [vmem:[#allocation7 + $0x90] sm:$0xf]
        %v1045 = vld [vmem:[#allocation7 + $0x94] sm:$0xf]
        %v1046 = vld [vmem:[#allocation7 + $0x98] sm:$0xf]
        %v1047 = vld [vmem:[#allocation7 + $0x9c] sm:$0xf]
        %v1048 = vld [vmem:[#allocation7 + $0xa0] sm:$0xf]
        %v1049 = vld [vmem:[#allocation7 + $0xa4] sm:$0xf]
        %v1050 = vld [vmem:[#allocation7 + $0xa8] sm:$0xf]
        %v1051 = vld [vmem:[#allocation7 + $0xac] sm:$0xf]
        %v1052 = vld [vmem:[#allocation7 + $0xb0] sm:$0xf]
        %v1053 = vld [vmem:[#allocation7 + $0xb4] sm:$0xf]
        %v1054 = vld [vmem:[#allocation7 + $0xb8] sm:$0xf]
        %v1055 = vld [vmem:[#allocation7 + $0xbc] sm:$0xf]
        %v1056 = vld [vmem:[#allocation7 + $0xc0] sm:$0xf]
        %v1057 = vld [vmem:[#allocation7 + $0xc4] sm:$0xf]
        %v1058 = vld [vmem:[#allocation7 + $0xc8] sm:$0xf]
        %v1059 = vld [vmem:[#allocation7 + $0xcc] sm:$0xf]
        %v1060 = vld [vmem:[#allocation7 + $0xd0] sm:$0xf]
        %v1061 = vld [vmem:[#allocation7 + $0xd4] sm:$0xf]
        %v1062 = vld [vmem:[#allocation7 + $0xd8] sm:$0xf]
        %v1063 = vld [vmem:[#allocation7 + $0xdc] sm:$0xf]
        %v1064 = vld [vmem:[#allocation7 + $0xe0] sm:$0xf]
        %v1065 = vld [vmem:[#allocation7 + $0xe4] sm:$0xf]
        %v1066 = vld [vmem:[#allocation7 + $0xe8] sm:$0xf]
        %v1067 = vld [vmem:[#allocation7 + $0xec] sm:$0xf]
        %v1068 = vld [vmem:[#allocation7 + $0xf0] sm:$0xf]
        %v1069 = vld [vmem:[#allocation7 + $0xf4] sm:$0xf]
        %v1070 = vld [vmem:[#allocation7 + $0xf8] sm:$0xf]
        %v1071 = vld [vmem:[#allocation7 + $0xfc] sm:$0xf]
        %v1136 = vunpack.c.l.b16 %v1008
        %v1137 = vunpack.c.l.b16 %v1009
        %v1138 = vunpack.c.l.b16 %v1010
        %v1139 = vunpack.c.l.b16 %v1011
        %v1140 = vunpack.c.l.b16 %v1012
        %v1141 = vunpack.c.l.b16 %v1013
        %v1142 = vunpack.c.l.b16 %v1014
        %v1143 = vunpack.c.l.b16 %v1015
        %v1144 = vunpack.c.l.b16 %v1016
        %v1145 = vunpack.c.l.b16 %v1017
        %v1146 = vunpack.c.l.b16 %v1018
        %v1147 = vunpack.c.l.b16 %v1019
        %v1148 = vunpack.c.l.b16 %v1020
        %v1149 = vunpack.c.l.b16 %v1021
        %v1150 = vunpack.c.l.b16 %v1022
        %v1151 = vunpack.c.l.b16 %v1023
        %v1152 = vunpack.c.l.b16 %v1024
        %v1153 = vunpack.c.l.b16 %v1025
        %v1154 = vunpack.c.l.b16 %v1026
        %v1155 = vunpack.c.l.b16 %v1027
        %v1156 = vunpack.c.l.b16 %v1028
        %v1157 = vunpack.c.l.b16 %v1029
        %v1158 = vunpack.c.l.b16 %v1030
        %v1159 = vunpack.c.l.b16 %v1031
        %v1160 = vunpack.c.l.b16 %v1032
        %v1161 = vunpack.c.l.b16 %v1033
        %v1162 = vunpack.c.l.b16 %v1034
        %v1163 = vunpack.c.l.b16 %v1035
        %v1164 = vunpack.c.l.b16 %v1036
        %v1165 = vunpack.c.l.b16 %v1037
        %v1166 = vunpack.c.l.b16 %v1038
        %v1167 = vunpack.c.l.b16 %v1039
        %v1168 = vunpack.c.l.b16 %v1040
        %v1169 = vunpack.c.l.b16 %v1041
        %v1170 = vunpack.c.l.b16 %v1042
        %v1171 = vunpack.c.l.b16 %v1043
        %v1172 = vunpack.c.l.b16 %v1044
        %v1173 = vunpack.c.l.b16 %v1045
        %v1174 = vunpack.c.l.b16 %v1046
        %v1175 = vunpack.c.l.b16 %v1047
        %v1176 = vunpack.c.l.b16 %v1048
        %v1177 = vunpack.c.l.b16 %v1049
        %v1178 = vunpack.c.l.b16 %v1050
        %v1179 = vunpack.c.l.b16 %v1051
        %v1180 = vunpack.c.l.b16 %v1052
        %v1181 = vunpack.c.l.b16 %v1053
        %v1182 = vunpack.c.l.b16 %v1054
        %v1183 = vunpack.c.l.b16 %v1055
        %v1184 = vunpack.c.l.b16 %v1056
        %v1185 = vunpack.c.l.b16 %v1057
        %v1186 = vunpack.c.l.b16 %v1058
        %v1187 = vunpack.c.l.b16 %v1059
        %v1188 = vunpack.c.l.b16 %v1060
        %v1189 = vunpack.c.l.b16 %v1061
        %v1190 = vunpack.c.l.b16 %v1062
        %v1191 = vunpack.c.l.b16 %v1063
        %v1192 = vunpack.c.l.b16 %v1064
        %v1193 = vunpack.c.l.b16 %v1065
        %v1194 = vunpack.c.l.b16 %v1066
        %v1195 = vunpack.c.l.b16 %v1067
        %v1196 = vunpack.c.l.b16 %v1068
        %v1197 = vunpack.c.l.b16 %v1069
        %v1198 = vunpack.c.l.b16 %v1070
        %v1199 = vunpack.c.l.b16 %v1071
        %v1200 = vpack.c.b16 %v1137, %v1136
        %v1201 = vpack.c.b16 %v1139, %v1138
        %v1202 = vpack.c.b16 %v1141, %v1140
        %v1203 = vpack.c.b16 %v1143, %v1142
        %v1204 = vpack.c.b16 %v1145, %v1144
        %v1205 = vpack.c.b16 %v1147, %v1146
        %v1206 = vpack.c.b16 %v1149, %v1148
        %v1207 = vpack.c.b16 %v1151, %v1150
        %v1208 = vpack.c.b16 %v1153, %v1152
        %v1209 = vpack.c.b16 %v1155, %v1154
        %v1210 = vpack.c.b16 %v1157, %v1156
        %v1211 = vpack.c.b16 %v1159, %v1158
        %v1212 = vpack.c.b16 %v1161, %v1160
        %v1213 = vpack.c.b16 %v1163, %v1162
        %v1214 = vpack.c.b16 %v1165, %v1164
        %v1215 = vpack.c.b16 %v1167, %v1166
        %v1216 = vpack.c.b16 %v1169, %v1168
        %v1217 = vpack.c.b16 %v1171, %v1170
        %v1218 = vpack.c.b16 %v1173, %v1172
        %v1219 = vpack.c.b16 %v1175, %v1174
        %v1220 = vpack.c.b16 %v1177, %v1176
        %v1221 = vpack.c.b16 %v1179, %v1178
        %v1222 = vpack.c.b16 %v1181, %v1180
        %v1223 = vpack.c.b16 %v1183, %v1182
        %v1224 = vpack.c.b16 %v1185, %v1184
        %v1225 = vpack.c.b16 %v1187, %v1186
        %v1226 = vpack.c.b16 %v1189, %v1188
        %v1227 = vpack.c.b16 %v1191, %v1190
        %v1228 = vpack.c.b16 %v1193, %v1192
        %v1229 = vpack.c.b16 %v1195, %v1194
        %v1230 = vpack.c.b16 %v1197, %v1196
        %v1231 = vpack.c.b16 %v1199, %v1198
        %1264 = vmatprep.subr.bf16.mxu0 0
        %1265 = vmatpush1.bf16.msra.mxu0 %v1200
        %1266 = vmatprep.subr.bf16.mxu0 0
        %1267 = vmatpush1.bf16.msra.mxu0 %v1201
        %1268 = vmatprep.subr.bf16.mxu0 0
        %1269 = vmatpush1.bf16.msra.mxu0 %v1202
        %1270 = vmatprep.subr.bf16.mxu0 0
        %1271 = vmatpush1.bf16.msra.mxu0 %v1203
        %1272 = vmatprep.subr.bf16.mxu0 0
        %1273 = vmatpush1.bf16.msra.mxu0 %v1204
        %1274 = vmatprep.subr.bf16.mxu0 0
        %1275 = vmatpush1.bf16.msra.mxu0 %v1205
        %1276 = vmatprep.subr.bf16.mxu0 0
        %1277 = vmatpush1.bf16.msra.mxu0 %v1206
        %1278 = vmatprep.subr.bf16.mxu0 0
        %1279 = vmatpush1.bf16.msra.mxu0 %v1207
        %1280 = vmatprep.subr.bf16.mxu0 0
        %1281 = vmatpush1.bf16.msra.mxu0 %v1208
        %1282 = vmatprep.subr.bf16.mxu0 0
        %1283 = vmatpush1.bf16.msra.mxu0 %v1209
        %1284 = vmatprep.subr.bf16.mxu0 0
        %1285 = vmatpush1.bf16.msra.mxu0 %v1210
        %1286 = vmatprep.subr.bf16.mxu0 0
        %1287 = vmatpush1.bf16.msra.mxu0 %v1211
        %1288 = vmatprep.subr.bf16.mxu0 0
        %1289 = vmatpush1.bf16.msra.mxu0 %v1212
        %1290 = vmatprep.subr.bf16.mxu0 0
        %1291 = vmatpush1.bf16.msra.mxu0 %v1213
        %1292 = vmatprep.subr.bf16.mxu0 0
        %1293 = vmatpush1.bf16.msra.mxu0 %v1214
        %1294 = vmatprep.subr.bf16.mxu0 0
        %1295 = vmatpush1.bf16.msra.mxu0 %v1215
        %1296 = vmatprep.mubr.bf16.mxu0 %v1005
        %1297 = vmatmul.mubr.bf16.gmra.mrb[0].mxu0 %v1004
        %v1298 = vpop.f32.mrb[0].mxu0
        %v1299 = vadd.f32 0.0, %v1298
        %v1300 = vpop.f32.mrb[0].mxu0
        %v1301 = vpop.f32.mrb[0].mxu0
        %v1302 = vpop.f32.mrb[0].mxu0
        %1303 = vdwg.mxu0
        %1304 = vmatprep.subr.bf16.mxu0 0
        %1305 = vmatpush1.bf16.msra.mxu0 %v1216
        %1306 = vmatprep.subr.bf16.mxu0 0
        %1307 = vmatpush1.bf16.msra.mxu0 %v1217
        %1308 = vmatprep.subr.bf16.mxu0 0
        %1309 = vmatpush1.bf16.msra.mxu0 %v1218
        %1310 = vmatprep.subr.bf16.mxu0 0
        %1311 = vmatpush1.bf16.msra.mxu0 %v1219
        %1312 = vmatprep.subr.bf16.mxu0 0
        %1313 = vmatpush1.bf16.msra.mxu0 %v1220
        %1314 = vmatprep.subr.bf16.mxu0 0
        %1315 = vmatpush1.bf16.msra.mxu0 %v1221
        %1316 = vmatprep.subr.bf16.mxu0 0
        %1317 = vmatpush1.bf16.msra.mxu0 %v1222
        %1318 = vmatprep.subr.bf16.mxu0 0
        %1319 = vmatpush1.bf16.msra.mxu0 %v1223
        %1320 = vmatprep.subr.bf16.mxu0 0
        %1321 = vmatpush1.bf16.msra.mxu0 %v1224
        %1322 = vmatprep.subr.bf16.mxu0 0
        %1323 = vmatpush1.bf16.msra.mxu0 %v1225
        %1324 = vmatprep.subr.bf16.mxu0 0
        %1325 = vmatpush1.bf16.msra.mxu0 %v1226
        %1326 = vmatprep.subr.bf16.mxu0 0
        %1327 = vmatpush1.bf16.msra.mxu0 %v1227
        %1328 = vmatprep.subr.bf16.mxu0 0
        %1329 = vmatpush1.bf16.msra.mxu0 %v1228
        %1330 = vmatprep.subr.bf16.mxu0 0
        %1331 = vmatpush1.bf16.msra.mxu0 %v1229
        %1332 = vmatprep.subr.bf16.mxu0 0
        %1333 = vmatpush1.bf16.msra.mxu0 %v1230
        %1334 = vmatprep.subr.bf16.mxu0 0
        %1335 = vmatpush1.bf16.msra.mxu0 %v1231
        %1336 = vmatprep.mubr.bf16.mxu0 %v1007
        %1337 = vmatmul.mubr.bf16.gmra.mrb[0].mxu0 %v1006
        %v1338 = vpop.f32.mrb[0].mxu0
        %v1339 = vadd.f32 %v1299, %v1338
        %v1340 = vpop.f32.mrb[0].mxu0
        %v1341 = vpop.f32.mrb[0].mxu0
        %v1342 = vpop.f32.mrb[0].mxu0
        %1343 = vdwg.mxu0
        %v1344 = vmax.f32 %v1339, 1e-10
        %v1345 = vlog2.pop %v1344
        %v1346 = vmul.f32 %v1345, 0.6931472
        %v1347 = vmul.f32 %v1346, 0.4342945
        %1348 = vst [vmem:[%s215] sm:$0xff] %v1347
        %s1349 = sand.u32 %s97, 1
        %s1350 = scalar_lea.sflag [#allocation4], %s1349
        %s1351 = sand.u32 %s97, 1
        %s1352 = smul.addr %s1351, 8
        %s1353 = scalar_lea.vmem [#allocation8], %s1352
        // Predicated region
        $region45: #{tpu_custom_call.1} parent=31 // pred_check
          %p1354 = pneg %p107
        $region46: #{tpu_custom_call.1} parent=31 // pred_check_branch
          %1356 = sbr.rel (%p1354) target = $region48
        $region47: #{tpu_custom_call.1} parent=31 // pred_region
          %s1358 = ssub.s32 128, 128
          %1359 = vsyncadd %s1350, %s1358
          %s1360 = smul.addr %s21, 128
          %s1361 = scalar_lea.hbm %s3, %s1360
          %s1363 = sshll.u32 %s1353, 4
          %s1364 = int_to_ptr.vmem [resolvable:$true] %s1363
          %1366 = dma.vmem_to_hbm [thread:$0]  %s1364, 128, %s1361, %s1350
        $region48: #{tpu_custom_call.1} parent=31 // pred_fallthru
          _
      $region32: #{tpu_custom_call.1} parent=5 // pred_fallthru
        _
      %p1367 = scmp.le.s32.totalorder 2, %s16
      // Predicated region
      $region49: #{tpu_custom_call.1} parent=5 // pred_check
        %p1368 = pneg %p1367
      $region50: #{tpu_custom_call.1} parent=5 // pred_check_branch
        %1370 = sbr.rel (%p1368) target = $region52
      $region51: #{tpu_custom_call.1} parent=5 // pred_region
        %s1371 = ssub.s32 %s16, 2
        // Predicated region
        $region53: #{tpu_custom_call.1} parent=51 // pred_check
          %p1372 = pneg %p113
        $region54: #{tpu_custom_call.1} parent=51 // pred_check_branch
          %1374 = sbr.rel (%p1372) target = $region56
        $region55: #{tpu_custom_call.1} parent=51 // pred_region
          %s1375 = sand.u32 %s98, 1
          %s1376 = scalar_lea.sflag [#allocation4], %s1375
          %s1377 = sand.u32 %s98, 1
          %s1378 = smul.addr %s1377, 8
          %s1379 = scalar_lea.vmem [#allocation8], %s1378
          %1380 = dma.done %s1376, 128
        $region56: #{tpu_custom_call.1} parent=51 // pred_fallthru
          _
      $region52: #{tpu_custom_call.1} parent=5 // pred_fallthru
        _
    $region6: #{tpu_custom_call.1} parent=1 // loop_footer
      %s20 = sadd.s32 1, %s16
    $region7: #{tpu_custom_call.1} parent=1 // loop_footer_branch
      %15 = sbr.rel target = $region3
    $region8: #{tpu_custom_call.1} parent=1 // loop_exit
      _
    %1381 = vsyncpa [#allocation3], 1
    %s1382 = scalar_lea.sflag [#allocation3], 1
    %1383 = vsyncpa %s1382, 1
    %1384 = vsyncpa [#allocation6], 1
    %1385 = vsyncpa [#allocation4], 1
    %s1386 = scalar_lea.sflag [#allocation4], 1
    %1387 = vsyncpa %s1386, 1

// kernel: tpu_custom_call.1
$region0: #{tpu_custom_call.1}
  #allocation0 [shape = 'u32[]', space=smem, size = 0x4, offset = 0x4, fixed_abs, tag = 'smem constant byte address 0x4 - core index']
  #allocation1 [shape = 'u32[144,128]{1,0:T(1,128)}', space=vmem, size = 0x12000, scoped, tag = 'internal scratch']
  %s0 = inlined_call_operand.hbm [shape: bf16[16,400], index: 0, kind: input, shape index: {}]
  %s1 = inlined_call_operand.hbm [shape: bf16[400,512], index: 1, kind: input, shape index: {}]
  %s2 = inlined_call_operand.hbm [shape: bf16[512,128], index: 2, kind: input, shape index: {}]
  %s3 = inlined_call_operand.hbm [shape: f32[16,128], index: 3, kind: output, shape index: {}]
  %s4 = sld [smem:[#allocation0]]
  $region57: #{tpu_custom_call.1} parent=0
    _
  %s6 = ssub.s32 1, %s4
  %s7 = scalar_select 0, %s6, %s4
  $region1: #{tpu_custom_call.1} parent=0
    #allocation2 [shape = 'u8[16384]{0}', space=vmem, size = 0x4000, scoped, tag = 'input window, operand 0']
    #allocation3 [shape = 's32[2]{0}', space=sflag, size = 0x8, scoped, tag = 'scoped memory for tpu_custom_call.1']
    #allocation4 [shape = 's32[2]{0}', space=sflag, size = 0x8, scoped, tag = 'scoped memory for tpu_custom_call.1']
    #allocation5 [shape = 'u8[409600]{0}', space=vmem, size = 0x64000, scoped, tag = 'input window, operand 1, single buffered']
    #allocation6 [shape = 's32[1]{0}', space=sflag, size = 0x4, scoped, tag = 'scoped memory for tpu_custom_call.1']
    #allocation7 [shape = 'u8[131072]{0}', space=vmem, size = 0x20000, scoped, tag = 'input window, operand 2, single buffered']
    #allocation8 [shape = 'u8[8192]{0}', space=vmem, size = 0x2000, scoped, tag = 'output window, operand 0']
    %8 = vsyncpa [#allocation3], 0
    %s9 = scalar_lea.sflag [#allocation3], 1
    %10 = vsyncpa %s9, 0
    %11 = vsyncpa [#allocation6], 0
    %12 = vsyncpa [#allocation4], 0
    %s13 = scalar_lea.sflag [#allocation4], 1
    %14 = vsyncpa %s13, 0
    loop: start=0, step=1, limit=4
    $region2: #{tpu_custom_call.1} parent=1 // loop_pre_header
      _
    $region3: #{tpu_custom_call.1} parent=1 // loop_header
      %s16 = sphi 0, %s20
      %p17 = scmp.ge.s32.totalorder %s16, 4
      %s26 = sphi 0, %s28
      %s29 = sphi 0, %s26
      %s30 = sphi 0, %s29
      %s46 = sphi 0, %s30
      %s50 = sphi 0, %s50
      %s52 = sphi 0, %s50
      %s53 = sphi 0, %s52
      %s67 = sphi 0, %s53
      %s71 = sphi 0, %s71
      %s73 = sphi 0, %s71
      %s74 = sphi 0, %s73
      %s88 = sphi 0, %s74
      %s94 = sphi 0, %s96
      %s97 = sphi 0, %s94
      %s98 = sphi 0, %s97
      %s114 = sphi 0, %s98
    $region4: #{tpu_custom_call.1} parent=1 // loop_header_branch
      %19 = sbr.rel (%p17) target = $region8
    $region5: #{tpu_custom_call.1} parent=1 // loop_body
      %s21 = ssub.s32 %s16, 1
      %s22 = ssub.s32 %s16, 2
      %s23 = sadd.s32 %s16, 1
      %s24 = ssub.s32 %s16, %s23
      %p25 = scmp.eq.s32.totalorder %s24, 0
      %s27 = sadd.s32 %s26, 1
      %s28 = scalar_select %p25, %s26, %s27
      %p31 = pneg %p25
      %p32 = scmp.eq.s32.totalorder %s16, 1
      %p33 = por %p31, %p32
      %p34 = scmp.ne.s32.totalorder %s26, %s29
      %p35 = scmp.eq.s32.totalorder %s16, 0
      %p36 = por %p34, %p35
      %p37 = scmp.ne.s32.totalorder %s26, %s29
      %p38 = scmp.eq.s32.totalorder %s21, 1
      %p39 = por %p37, %p38
      %p40 = scmp.ne.s32.totalorder %s29, %s30
      %p41 = scmp.eq.s32.totalorder %s21, 0
      %p42 = por %p40, %p41
      %p43 = scmp.ne.s32.totalorder %s29, %s30
      %p44 = scmp.eq.s32.totalorder %s22, 1
      %p45 = por %p43, %p44
      %p47 = scmp.ne.s32.totalorder %s30, %s46
      %p48 = scmp.eq.s32.totalorder %s22, 0
      %p49 = por %p47, %p48
      %s51 = sadd.s32 %s50, 1
      %p54 = scmp.eq.s32.totalorder %s16, 1
      %p55 = scmp.ne.s32.totalorder %s50, %s52
      %p56 = scmp.eq.s32.totalorder %s16, 0
      %p57 = por %p55, %p56
      %p58 = scmp.ne.s32.totalorder %s50, %s52
      %p59 = scmp.eq.s32.totalorder %s21, 1
      %p60 = por %p58, %p59
      %p61 = scmp.ne.s32.totalorder %s52, %s53
      %p62 = scmp.eq.s32.totalorder %s21, 0
      %p63 = por %p61, %p62
      %p64 = scmp.ne.s32.totalorder %s52, %s53
      %p65 = scmp.eq.s32.totalorder %s22, 1
      %p66 = por %p64, %p65
      %p68 = scmp.ne.s32.totalorder %s53, %s67
      %p69 = scmp.eq.s32.totalorder %s22, 0
      %p70 = por %p68, %p69
      %s72 = sadd.s32 %s71, 1
      %p75 = scmp.eq.s32.totalorder %s16, 1
      %p76 = scmp.ne.s32.totalorder %s71, %s73
      %p77 = scmp.eq.s32.totalorder %s16, 0
      %p78 = por %p76, %p77
      %p79 = scmp.ne.s32.totalorder %s71, %s73
      %p80 = scmp.eq.s32.totalorder %s21, 1
      %p81 = por %p79, %p80
      %p82 = scmp.ne.s32.totalorder %s73, %s74
      %p83 = scmp.eq.s32.totalorder %s21, 0
      %p84 = por %p82, %p83
      %p85 = scmp.ne.s32.totalorder %s73, %s74
      %p86 = scmp.eq.s32.totalorder %s22, 1
      %p87 = por %p85, %p86
      %p89 = scmp.ne.s32.totalorder %s74, %s88
      %p90 = scmp.eq.s32.totalorder %s22, 0
      %p91 = por %p89, %p90
      %s92 = ssub.s32 %s16, %s23
      %p93 = scmp.eq.s32.totalorder %s92, 0
      %s95 = sadd.s32 %s94, 1
      %s96 = scalar_select %p93, %s94, %s95
      %p99 = pneg %p93
      %p100 = scmp.eq.s32.totalorder %s16, 1
      %p101 = por %p99, %p100
      %p102 = scmp.ne.s32.totalorder %s94, %s97
      %p103 = scmp.eq.s32.totalorder %s16, 0
      %p104 = por %p102, %p103
      %p105 = scmp.ne.s32.totalorder %s94, %s97
      %p106 = scmp.eq.s32.totalorder %s21, 1
      %p107 = por %p105, %p106
      %p108 = scmp.ne.s32.totalorder %s97, %s98
      %p109 = scmp.eq.s32.totalorder %s21, 0
      %p110 = por %p108, %p109
      %p111 = scmp.ne.s32.totalorder %s97, %s98
      %p112 = scmp.eq.s32.totalorder %s22, 1
      %p113 = por %p111, %p112
      %p115 = scmp.ne.s32.totalorder %s98, %s114
      %p116 = scmp.eq.s32.totalorder %s22, 0
      %p117 = por %p115, %p116
      %p118 = scmp.le.s32.totalorder 1, %s16
      %p119 = scmp.lt.s32.totalorder %s16, 3
      %p120 = pnand %p118, %p119
      %p121 = pneg %p120
      // Predicated region
      $region9: #{tpu_custom_call.1} parent=5 // pred_check
        _
      $region10: #{tpu_custom_call.1} parent=5 // pred_check_branch
        %123 = sbr.rel (%p120) target = $region12
      $region11: #{tpu_custom_call.1} parent=5 // pred_region
        %s124 = ssub.s32 %s16, 1
        // Predicated region
        $region13: #{tpu_custom_call.1} parent=11 // pred_check
          %p125 = pneg %p63
        $region14: #{tpu_custom_call.1} parent=11 // pred_check_branch
          %127 = sbr.rel (%p125) target = $region16
        $region15: #{tpu_custom_call.1} parent=11 // pred_region
          %s129 = ssub.s32 12800, 12800
          %130 = vsyncadd [#allocation6], %s129
          %s131 = sshll.u32 [#allocation5], 4
          %s132 = int_to_ptr.vmem [resolvable:$true] %s131
          %137 = dma.hbm_to_vmem [thread:$0]  %s1, 12800, %s132, [#allocation6], 256, 256, 16
        $region16: #{tpu_custom_call.1} parent=11 // pred_fallthru
          _
        // Predicated region
        $region17: #{tpu_custom_call.1} parent=11 // pred_check
          %p138 = pneg %p84
        $region18: #{tpu_custom_call.1} parent=11 // pred_check_branch
          %140 = sbr.rel (%p138) target = $region20
        $region19: #{tpu_custom_call.1} parent=11 // pred_region
          %s142 = ssub.s32 4096, 4096
          %143 = vsyncadd [#allocation6], %s142
          %s144 = sshll.u32 [#allocation7], 4
          %s145 = int_to_ptr.vmem [resolvable:$true] %s144
          %150 = dma.hbm_to_vmem [thread:$0]  %s2, 4096, %s145, [#allocation6], 64, 64, 4
        $region20: #{tpu_custom_call.1} parent=11 // pred_fallthru
          _
      $region12: #{tpu_custom_call.1} parent=5 // pred_fallthru
        _
      %p151 = scmp.lt.s32.totalorder %s16, 2
      // Predicated region
      $region21: #{tpu_custom_call.1} parent=5 // pred_check
        %p152 = pneg %p151
      $region22: #{tpu_custom_call.1} parent=5 // pred_check_branch
        %154 = sbr.rel (%p152) target = $region24
      $region23: #{tpu_custom_call.1} parent=5 // pred_region
        // Predicated region
        $region25: #{tpu_custom_call.1} parent=23 // pred_check
          %p155 = pneg %p36
        $region26: #{tpu_custom_call.1} parent=23 // pred_check_branch
          %157 = sbr.rel (%p155) target = $region28
        $region27: #{tpu_custom_call.1} parent=23 // pred_region
          %s158 = sand.u32 %s26, 1
          %s159 = scalar_lea.sflag [#allocation3], %s158
          %s160 = sand.u32 %s26, 1
          %s161 = smul.addr %s160, 16
          %s162 = scalar_lea.vmem [#allocation2], %s161
          %s164 = ssub.s32 256, 256
          %165 = vsyncadd %s159, %s164
          %s166 = smul.addr %s16, 4
          %s167 = smul.addr %s166, 64
          %s168 = scalar_lea.hbm %s0, %s167
          %s170 = sshll.u32 %s162, 4
          %s171 = int_to_ptr.vmem [resolvable:$true] %s170
          %173 = dma.hbm_to_vmem [thread:$0]  %s168, 256, %s171, %s159
        $region28: #{tpu_custom_call.1} parent=23 // pred_fallthru
          _
      $region24: #{tpu_custom_call.1} parent=5 // pred_fallthru
        _
      %p174 = scmp.le.s32.totalorder 1, %s16
      %p175 = scmp.lt.s32.totalorder %s16, 3
      %p176 = pnand %p174, %p175
      %p177 = pneg %p176
      // Predicated region
      $region29: #{tpu_custom_call.1} parent=5 // pred_check
        _
      $region30: #{tpu_custom_call.1} parent=5 // pred_check_branch
        %179 = sbr.rel (%p176) target = $region32
      $region31: #{tpu_custom_call.1} parent=5 // pred_region
        %s180 = ssub.s32 %s16, 1
        %s181 = sand.u32 %s29, 1
        %s182 = scalar_lea.sflag [#allocation3], %s181
        %s183 = sand.u32 %s29, 1
        %s184 = smul.addr %s183, 16
        %s185 = scalar_lea.vmem [#allocation2], %s184
        // Predicated region
        $region33: #{tpu_custom_call.1} parent=31 // pred_check
          %p186 = pneg %p42
        $region34: #{tpu_custom_call.1} parent=31 // pred_check_branch
          %188 = sbr.rel (%p186) target = $region36
        $region35: #{tpu_custom_call.1} parent=31 // pred_region
          %189 = dma.done %s182, 256
        $region36: #{tpu_custom_call.1} parent=31 // pred_fallthru
          _
        // Predicated region
        $region37: #{tpu_custom_call.1} parent=31 // pred_check
          %p190 = pneg %p63
        $region38: #{tpu_custom_call.1} parent=31 // pred_check_branch
          %192 = sbr.rel (%p190) target = $region40
        $region39: #{tpu_custom_call.1} parent=31 // pred_region
          %193 = dma.done [#allocation6], 12800
        $region40: #{tpu_custom_call.1} parent=31 // pred_fallthru
          _
        // Predicated region
        $region41: #{tpu_custom_call.1} parent=31 // pred_check
          %p194 = pneg %p84
        $region42: #{tpu_custom_call.1} parent=31 // pred_check_branch
          %196 = sbr.rel (%p194) target = $region44
        $region43: #{tpu_custom_call.1} parent=31 // pred_region
          %197 = dma.done [#allocation6], 4096
        $region44: #{tpu_custom_call.1} parent=31 // pred_fallthru
          _
        %s198 = sand.u32 %s29, 1
        %s199 = scalar_lea.sflag [#allocation3], %s198
        %s200 = sand.u32 %s29, 1
        %s201 = smul.addr %s200, 16
        %s202 = scalar_lea.vmem [#allocation2], %s201
        %p203 = pneg %p42
        %p204 = pneg %p39
        %p205 = pneg %p63
        %p206 = pneg %p60
        %p207 = pneg %p84
        %p208 = pneg %p81
        %p209 = pneg %p110
        %p210 = pneg %p107
        %s211 = sand.u32 %s97, 1
        %s212 = scalar_lea.sflag [#allocation4], %s211
        %s213 = sand.u32 %s97, 1
        %s214 = smul.addr %s213, 8
        %s215 = scalar_lea.vmem [#allocation8], %s214
        %v217 = vld [vmem:[%s185] sm:$0xff]
        %v218 = vld [vmem:[%s185 + $0x8] sm:$0xff]
        %v219 = vld [vmem:[#allocation5] sm:$0xff]
        %v220 = vld [vmem:[#allocation5 + $0x8] sm:$0xff]
        %v221 = vld [vmem:[#allocation5 + $0x10] sm:$0xff]
        %v222 = vld [vmem:[#allocation5 + $0x18] sm:$0xff]
        %v223 = vld [vmem:[#allocation5 + $0x20] sm:$0xff]
        %v224 = vld [vmem:[#allocation5 + $0x28] sm:$0xff]
        %v225 = vld [vmem:[#allocation5 + $0x30] sm:$0xff]
        %v226 = vld [vmem:[#allocation5 + $0x38] sm:$0xff]
        %v227 = vld [vmem:[#allocation5 + $0x40] sm:$0xff]
        %v228 = vld [vmem:[#allocation5 + $0x48] sm:$0xff]
        %v229 = vld [vmem:[#allocation5 + $0x50] sm:$0xff]
        %v230 = vld [vmem:[#allocation5 + $0x58] sm:$0xff]
        %v231 = vld [vmem:[#allocation5 + $0x60] sm:$0xff]
        %v232 = vld [vmem:[#allocation5 + $0x68] sm:$0xff]
        %v233 = vld [vmem:[#allocation5 + $0x70] sm:$0xff]
        %v234 = vld [vmem:[#allocation5 + $0x78] sm:$0xff]
        %v235 = vld [vmem:[#allocation5 + $0x80] sm:$0xff]
        %v236 = vld [vmem:[#allocation5 + $0x88] sm:$0xff]
        %v237 = vld [vmem:[#allocation5 + $0x90] sm:$0xff]
        %v238 = vld [vmem:[#allocation5 + $0x98] sm:$0xff]
        %v239 = vld [vmem:[#allocation5 + $0xa0] sm:$0xff]
        %v240 = vld [vmem:[#allocation5 + $0xa8] sm:$0xff]
        %v241 = vld [vmem:[#allocation5 + $0xb0] sm:$0xff]
        %v242 = vld [vmem:[#allocation5 + $0xb8] sm:$0xff]
        %v243 = vld [vmem:[#allocation5 + $0xc0] sm:$0xff]
        %v244 = vld [vmem:[#allocation5 + $0xc8] sm:$0xff]
        %v245 = vld [vmem:[#allocation5 + $0xd0] sm:$0xff]
        %v246 = vld [vmem:[#allocation5 + $0xd8] sm:$0xff]
        %v247 = vld [vmem:[#allocation5 + $0xe0] sm:$0xff]
        %v248 = vld [vmem:[#allocation5 + $0xe8] sm:$0xff]
        %v249 = vld [vmem:[#allocation5 + $0xf0] sm:$0xff]
        %v250 = vld [vmem:[#allocation5 + $0xf8] sm:$0xff]
        %v251 = vld [vmem:[#allocation5 + $0x100] sm:$0xff]
        %v252 = vld [vmem:[#allocation5 + $0x108] sm:$0xff]
        %v253 = vld [vmem:[#allocation5 + $0x110] sm:$0xff]
        %v254 = vld [vmem:[#allocation5 + $0x118] sm:$0xff]
        %v255 = vld [vmem:[#allocation5 + $0x120] sm:$0xff]
        %v256 = vld [vmem:[#allocation5 + $0x128] sm:$0xff]
        %v257 = vld [vmem:[#allocation5 + $0x130] sm:$0xff]
        %v258 = vld [vmem:[#allocation5 + $0x138] sm:$0xff]
        %v259 = vld [vmem:[#allocation5 + $0x140] sm:$0xff]
        %v260 = vld [vmem:[#allocation5 + $0x148] sm:$0xff]
        %v261 = vld [vmem:[#allocation5 + $0x150] sm:$0xff]
        %v262 = vld [vmem:[#allocation5 + $0x158] sm:$0xff]
        %v263 = vld [vmem:[#allocation5 + $0x160] sm:$0xff]
        %v264 = vld [vmem:[#allocation5 + $0x168] sm:$0xff]
        %v265 = vld [vmem:[#allocation5 + $0x170] sm:$0xff]
        %v266 = vld [vmem:[#allocation5 + $0x178] sm:$0xff]
        %v267 = vld [vmem:[#allocation5 + $0x180] sm:$0xff]
        %v268 = vld [vmem:[#allocation5 + $0x188] sm:$0xff]
        %v269 = vld [vmem:[#allocation5 + $0x190] sm:$0xff]
        %v270 = vld [vmem:[#allocation5 + $0x198] sm:$0xff]
        %v271 = vld [vmem:[#allocation5 + $0x1a0] sm:$0xff]
        %v272 = vld [vmem:[#allocation5 + $0x1a8] sm:$0xff]
        %v273 = vld [vmem:[#allocation5 + $0x1b0] sm:$0xff]
        %v274 = vld [vmem:[#allocation5 + $0x1b8] sm:$0xff]
        %v275 = vld [vmem:[#allocation5 + $0x1c0] sm:$0xff]
        %v276 = vld [vmem:[#allocation5 + $0x1c8] sm:$0xff]
        %v277 = vld [vmem:[#allocation5 + $0x1d0] sm:$0xff]
        %v278 = vld [vmem:[#allocation5 + $0x1d8] sm:$0xff]
        %v279 = vld [vmem:[#allocation5 + $0x1e0] sm:$0xff]
        %v280 = vld [vmem:[#allocation5 + $0x1e8] sm:$0xff]
        %v281 = vld [vmem:[#allocation5 + $0x1f0] sm:$0xff]
        %v282 = vld [vmem:[#allocation5 + $0x1f8] sm:$0xff]
        %v283 = vld [vmem:[#allocation5 + $0x200] sm:$0xff]
        %v284 = vld [vmem:[#allocation5 + $0x208] sm:$0xff]
        %v285 = vld [vmem:[#allocation5 + $0x210] sm:$0xff]
        %v286 = vld [vmem:[#allocation5 + $0x218] sm:$0xff]
        %v287 = vld [vmem:[#allocation5 + $0x220] sm:$0xff]
        %v288 = vld [vmem:[#allocation5 + $0x228] sm:$0xff]
        %v289 = vld [vmem:[#allocation5 + $0x230] sm:$0xff]
        %v290 = vld [vmem:[#allocation5 + $0x238] sm:$0xff]
        %v291 = vld [vmem:[#allocation5 + $0x240] sm:$0xff]
        %v292 = vld [vmem:[#allocation5 + $0x248] sm:$0xff]
        %v293 = vld [vmem:[#allocation5 + $0x250] sm:$0xff]
        %v294 = vld [vmem:[#allocation5 + $0x258] sm:$0xff]
        %v295 = vld [vmem:[#allocation5 + $0x260] sm:$0xff]
        %v296 = vld [vmem:[#allocation5 + $0x268] sm:$0xff]
        %v297 = vld [vmem:[#allocation5 + $0x270] sm:$0xff]
        %v298 = vld [vmem:[#allocation5 + $0x278] sm:$0xff]
        %v299 = vld [vmem:[#allocation5 + $0x280] sm:$0xff]
        %v300 = vld [vmem:[#allocation5 + $0x288] sm:$0xff]
        %v301 = vld [vmem:[#allocation5 + $0x290] sm:$0xff]
        %v302 = vld [vmem:[#allocation5 + $0x298] sm:$0xff]
        %v303 = vld [vmem:[#allocation5 + $0x2a0] sm:$0xff]
        %v304 = vld [vmem:[#allocation5 + $0x2a8] sm:$0xff]
        %v305 = vld [vmem:[#allocation5 + $0x2b0] sm:$0xff]
        %v306 = vld [vmem:[#allocation5 + $0x2b8] sm:$0xff]
        %v307 = vld [vmem:[#allocation5 + $0x2c0] sm:$0xff]
        %v308 = vld [vmem:[#allocation5 + $0x2c8] sm:$0xff]
        %v309 = vld [vmem:[#allocation5 + $0x2d0] sm:$0xff]
        %v310 = vld [vmem:[#allocation5 + $0x2d8] sm:$0xff]
        %v311 = vld [vmem:[#allocation5 + $0x2e0] sm:$0xff]
        %v312 = vld [vmem:[#allocation5 + $0x2e8] sm:$0xff]
        %v313 = vld [vmem:[#allocation5 + $0x2f0] sm:$0xff]
        %v314 = vld [vmem:[#allocation5 + $0x2f8] sm:$0xff]
        %v315 = vld [vmem:[#allocation5 + $0x300] sm:$0xff]
        %v316 = vld [vmem:[#allocation5 + $0x308] sm:$0xff]
        %v317 = vld [vmem:[#allocation5 + $0x310] sm:$0xff]
        %v318 = vld [vmem:[#allocation5 + $0x318] sm:$0xff]
        %v321 = vunpack.c.l.b16 %v217
        %v322 = vunpack.c.h.b16 %v217
        %v323 = vunpack.c.l.b16 %v218
        %v324 = vunpack.c.h.b16 %v218
        %v325 = vpack.c.b16 %v321, %v321
        %v326 = vpack.c.b16 %v322, %v322
        %v327 = vpack.c.b16 %v323, %v323
        %v328 = vpack.c.b16 %v324, %v324
        %v432 = vunpack.c.l.b16 %v219
        %v433 = vunpack.c.h.b16 %v219
        %v434 = vunpack.c.l.b16 %v220
        %v435 = vunpack.c.h.b16 %v220
        %v436 = vunpack.c.l.b16 %v221
        %v437 = vunpack.c.h.b16 %v221
        %v438 = vunpack.c.l.b16 %v222
        %v439 = vunpack.c.h.b16 %v222
        %v440 = vunpack.c.l.b16 %v223
        %v441 = vunpack.c.h.b16 %v223
        %v442 = vunpack.c.l.b16 %v224
        %v443 = vunpack.c.h.b16 %v224
        %v444 = vunpack.c.l.b16 %v225
        %v445 = vunpack.c.h.b16 %v225
        %v446 = vunpack.c.l.b16 %v226
        %v447 = vunpack.c.h.b16 %v226
        %v448 = vunpack.c.l.b16 %v227
        %v449 = vunpack.c.h.b16 %v227
        %v450 = vunpack.c.l.b16 %v228
        %v451 = vunpack.c.h.b16 %v228
        %v452 = vunpack.c.l.b16 %v229
        %v453 = vunpack.c.h.b16 %v229
        %v454 = vunpack.c.l.b16 %v230
        %v455 = vunpack.c.h.b16 %v230
        %v456 = vunpack.c.l.b16 %v231
        %v457 = vunpack.c.h.b16 %v231
        %v458 = vunpack.c.l.b16 %v232
        %v459 = vunpack.c.h.b16 %v232
        %v460 = vunpack.c.l.b16 %v233
        %v461 = vunpack.c.h.b16 %v233
        %v462 = vunpack.c.l.b16 %v234
        %v463 = vunpack.c.h.b16 %v234
        %v464 = vunpack.c.l.b16 %v235
        %v465 = vunpack.c.h.b16 %v235
        %v466 = vunpack.c.l.b16 %v236
        %v467 = vunpack.c.h.b16 %v236
        %v468 = vunpack.c.l.b16 %v237
        %v469 = vunpack.c.h.b16 %v237
        %v470 = vunpack.c.l.b16 %v238
        %v471 = vunpack.c.h.b16 %v238
        %v472 = vunpack.c.l.b16 %v239
        %v473 = vunpack.c.h.b16 %v239
        %v474 = vunpack.c.l.b16 %v240
        %v475 = vunpack.c.h.b16 %v240
        %v476 = vunpack.c.l.b16 %v241
        %v477 = vunpack.c.h.b16 %v241
        %v478 = vunpack.c.l.b16 %v242
        %v479 = vunpack.c.h.b16 %v242
        %v480 = vunpack.c.l.b16 %v243
        %v481 = vunpack.c.h.b16 %v243
        %v482 = vunpack.c.l.b16 %v244
        %v483 = vunpack.c.h.b16 %v244
        %v484 = vunpack.c.l.b16 %v245
        %v485 = vunpack.c.h.b16 %v245
        %v486 = vunpack.c.l.b16 %v246
        %v487 = vunpack.c.h.b16 %v246
        %v488 = vunpack.c.l.b16 %v247
        %v489 = vunpack.c.h.b16 %v247
        %v490 = vunpack.c.l.b16 %v248
        %v491 = vunpack.c.h.b16 %v248
        %v492 = vunpack.c.l.b16 %v249
        %v493 = vunpack.c.h.b16 %v249
        %v494 = vunpack.c.l.b16 %v250
        %v495 = vunpack.c.h.b16 %v250
        %v496 = vunpack.c.l.b16 %v251
        %v497 = vunpack.c.h.b16 %v251
        %v498 = vunpack.c.l.b16 %v252
        %v499 = vunpack.c.h.b16 %v252
        %v500 = vunpack.c.l.b16 %v253
        %v501 = vunpack.c.h.b16 %v253
        %v502 = vunpack.c.l.b16 %v254
        %v503 = vunpack.c.h.b16 %v254
        %v504 = vunpack.c.l.b16 %v255
        %v505 = vunpack.c.h.b16 %v255
        %v506 = vunpack.c.l.b16 %v256
        %v507 = vunpack.c.h.b16 %v256
        %v508 = vunpack.c.l.b16 %v257
        %v509 = vunpack.c.h.b16 %v257
        %v510 = vunpack.c.l.b16 %v258
        %v511 = vunpack.c.h.b16 %v258
        %v512 = vunpack.c.l.b16 %v259
        %v513 = vunpack.c.h.b16 %v259
        %v514 = vunpack.c.l.b16 %v260
        %v515 = vunpack.c.h.b16 %v260
        %v516 = vunpack.c.l.b16 %v261
        %v517 = vunpack.c.h.b16 %v261
        %v518 = vunpack.c.l.b16 %v262
        %v519 = vunpack.c.h.b16 %v262
        %v520 = vunpack.c.l.b16 %v263
        %v521 = vunpack.c.h.b16 %v263
        %v522 = vunpack.c.l.b16 %v264
        %v523 = vunpack.c.h.b16 %v264
        %v524 = vunpack.c.l.b16 %v265
        %v525 = vunpack.c.h.b16 %v265
        %v526 = vunpack.c.l.b16 %v266
        %v527 = vunpack.c.h.b16 %v266
        %v528 = vunpack.c.l.b16 %v267
        %v529 = vunpack.c.h.b16 %v267
        %v530 = vunpack.c.l.b16 %v268
        %v531 = vunpack.c.h.b16 %v268
        %v532 = vunpack.c.l.b16 %v269
        %v533 = vunpack.c.h.b16 %v269
        %v534 = vunpack.c.l.b16 %v270
        %v535 = vunpack.c.h.b16 %v270
        %v536 = vunpack.c.l.b16 %v271
        %v537 = vunpack.c.h.b16 %v271
        %v538 = vunpack.c.l.b16 %v272
        %v539 = vunpack.c.h.b16 %v272
        %v540 = vunpack.c.l.b16 %v273
        %v541 = vunpack.c.h.b16 %v273
        %v542 = vunpack.c.l.b16 %v274
        %v543 = vunpack.c.h.b16 %v274
        %v544 = vunpack.c.l.b16 %v275
        %v545 = vunpack.c.h.b16 %v275
        %v546 = vunpack.c.l.b16 %v276
        %v547 = vunpack.c.h.b16 %v276
        %v548 = vunpack.c.l.b16 %v277
        %v549 = vunpack.c.h.b16 %v277
        %v550 = vunpack.c.l.b16 %v278
        %v551 = vunpack.c.h.b16 %v278
        %v552 = vunpack.c.l.b16 %v279
        %v553 = vunpack.c.h.b16 %v279
        %v554 = vunpack.c.l.b16 %v280
        %v555 = vunpack.c.h.b16 %v280
        %v556 = vunpack.c.l.b16 %v281
        %v557 = vunpack.c.h.b16 %v281
        %v558 = vunpack.c.l.b16 %v282
        %v559 = vunpack.c.h.b16 %v282
        %v560 = vunpack.c.l.b16 %v283
        %v561 = vunpack.c.h.b16 %v283
        %v562 = vunpack.c.l.b16 %v284
        %v563 = vunpack.c.h.b16 %v284
        %v564 = vunpack.c.l.b16 %v285
        %v565 = vunpack.c.h.b16 %v285
        %v566 = vunpack.c.l.b16 %v286
        %v567 = vunpack.c.h.b16 %v286
        %v568 = vunpack.c.l.b16 %v287
        %v569 = vunpack.c.h.b16 %v287
        %v570 = vunpack.c.l.b16 %v288
        %v571 = vunpack.c.h.b16 %v288
        %v572 = vunpack.c.l.b16 %v289
        %v573 = vunpack.c.h.b16 %v289
        %v574 = vunpack.c.l.b16 %v290
        %v575 = vunpack.c.h.b16 %v290
        %v576 = vunpack.c.l.b16 %v291
        %v577 = vunpack.c.h.b16 %v291
        %v578 = vunpack.c.l.b16 %v292
        %v579 = vunpack.c.h.b16 %v292
        %v580 = vunpack.c.l.b16 %v293
        %v581 = vunpack.c.h.b16 %v293
        %v582 = vunpack.c.l.b16 %v294
        %v583 = vunpack.c.h.b16 %v294
        %v584 = vunpack.c.l.b16 %v295
        %v585 = vunpack.c.h.b16 %v295
        %v586 = vunpack.c.l.b16 %v296
        %v587 = vunpack.c.h.b16 %v296
        %v588 = vunpack.c.l.b16 %v297
        %v589 = vunpack.c.h.b16 %v297
        %v590 = vunpack.c.l.b16 %v298
        %v591 = vunpack.c.h.b16 %v298
        %v592 = vunpack.c.l.b16 %v299
        %v593 = vunpack.c.h.b16 %v299
        %v594 = vunpack.c.l.b16 %v300
        %v595 = vunpack.c.h.b16 %v300
        %v596 = vunpack.c.l.b16 %v301
        %v597 = vunpack.c.h.b16 %v301
        %v598 = vunpack.c.l.b16 %v302
        %v599 = vunpack.c.h.b16 %v302
        %v600 = vunpack.c.l.b16 %v303
        %v601 = vunpack.c.h.b16 %v303
        %v602 = vunpack.c.l.b16 %v304
        %v603 = vunpack.c.h.b16 %v304
        %v604 = vunpack.c.l.b16 %v305
        %v605 = vunpack.c.h.b16 %v305
        %v606 = vunpack.c.l.b16 %v306
        %v607 = vunpack.c.h.b16 %v306
        %v608 = vunpack.c.l.b16 %v307
        %v609 = vunpack.c.h.b16 %v307
        %v610 = vunpack.c.l.b16 %v308
        %v611 = vunpack.c.h.b16 %v308
        %v612 = vunpack.c.l.b16 %v309
        %v613 = vunpack.c.h.b16 %v309
        %v614 = vunpack.c.l.b16 %v310
        %v615 = vunpack.c.h.b16 %v310
        %v616 = vunpack.c.l.b16 %v311
        %v617 = vunpack.c.h.b16 %v311
        %v618 = vunpack.c.l.b16 %v312
        %v619 = vunpack.c.h.b16 %v312
        %v620 = vunpack.c.l.b16 %v313
        %v621 = vunpack.c.h.b16 %v313
        %v622 = vunpack.c.l.b16 %v314
        %v623 = vunpack.c.h.b16 %v314
        %v624 = vunpack.c.l.b16 %v315
        %v625 = vunpack.c.h.b16 %v315
        %v626 = vunpack.c.l.b16 %v316
        %v627 = vunpack.c.h.b16 %v316
        %v628 = vunpack.c.l.b16 %v317
        %v629 = vunpack.c.h.b16 %v317
        %v630 = vunpack.c.l.b16 %v318
        %v631 = vunpack.c.h.b16 %v318
        %v632 = vpack.c.b16 %v436, %v432
        %v633 = vpack.c.b16 %v437, %v433
        %v634 = vpack.c.b16 %v438, %v434
        %v635 = vpack.c.b16 %v439, %v435
        %v636 = vpack.c.b16 %v444, %v440
        %v637 = vpack.c.b16 %v445, %v441
        %v638 = vpack.c.b16 %v446, %v442
        %v639 = vpack.c.b16 %v447, %v443
        %v640 = vpack.c.b16 %v452, %v448
        %v641 = vpack.c.b16 %v453, %v449
        %v642 = vpack.c.b16 %v454, %v450
        %v643 = vpack.c.b16 %v455, %v451
        %v644 = vpack.c.b16 %v460, %v456
        %v645 = vpack.c.b16 %v461, %v457
        %v646 = vpack.c.b16 %v462, %v458
        %v647 = vpack.c.b16 %v463, %v459
        %v648 = vpack.c.b16 %v468, %v464
        %v649 = vpack.c.b16 %v469, %v465
        %v650 = vpack.c.b16 %v470, %v466
        %v651 = vpack.c.b16 %v471, %v467
        %v652 = vpack.c.b16 %v476, %v472
        %v653 = vpack.c.b16 %v477, %v473
        %v654 = vpack.c.b16 %v478, %v474
        %v655 = vpack.c.b16 %v479, %v475
        %v656 = vpack.c.b16 %v484, %v480
        %v657 = vpack.c.b16 %v485, %v481
        %v658 = vpack.c.b16 %v486, %v482
        %v659 = vpack.c.b16 %v487, %v483
        %v660 = vpack.c.b16 %v492, %v488
        %v661 = vpack.c.b16 %v493, %v489
        %v662 = vpack.c.b16 %v494, %v490
        %v663 = vpack.c.b16 %v495, %v491
        %v664 = vpack.c.b16 %v500, %v496
        %v665 = vpack.c.b16 %v501, %v497
        %v666 = vpack.c.b16 %v502, %v498
        %v667 = vpack.c.b16 %v503, %v499
        %v668 = vpack.c.b16 %v508, %v504
        %v669 = vpack.c.b16 %v509, %v505
        %v670 = vpack.c.b16 %v510, %v506
        %v671 = vpack.c.b16 %v511, %v507
        %v672 = vpack.c.b16 %v516, %v512
        %v673 = vpack.c.b16 %v517, %v513
        %v674 = vpack.c.b16 %v518, %v514
        %v675 = vpack.c.b16 %v519, %v515
        %v676 = vpack.c.b16 %v524, %v520
        %v677 = vpack.c.b16 %v525, %v521
        %v678 = vpack.c.b16 %v526, %v522
        %v679 = vpack.c.b16 %v527, %v523
        %v680 = vpack.c.b16 %v532, %v528
        %v681 = vpack.c.b16 %v533, %v529
        %v682 = vpack.c.b16 %v534, %v530
        %v683 = vpack.c.b16 %v535, %v531
        %v684 = vpack.c.b16 %v540, %v536
        %v685 = vpack.c.b16 %v541, %v537
        %v686 = vpack.c.b16 %v542, %v538
        %v687 = vpack.c.b16 %v543, %v539
        %v688 = vpack.c.b16 %v548, %v544
        %v689 = vpack.c.b16 %v549, %v545
        %v690 = vpack.c.b16 %v550, %v546
        %v691 = vpack.c.b16 %v551, %v547
        %v692 = vpack.c.b16 %v556, %v552
        %v693 = vpack.c.b16 %v557, %v553
        %v694 = vpack.c.b16 %v558, %v554
        %v695 = vpack.c.b16 %v559, %v555
        %v696 = vpack.c.b16 %v564, %v560
        %v697 = vpack.c.b16 %v565, %v561
        %v698 = vpack.c.b16 %v566, %v562
        %v699 = vpack.c.b16 %v567, %v563
        %v700 = vpack.c.b16 %v572, %v568
        %v701 = vpack.c.b16 %v573, %v569
        %v702 = vpack.c.b16 %v574, %v570
        %v703 = vpack.c.b16 %v575, %v571
        %v704 = vpack.c.b16 %v580, %v576
        %v705 = vpack.c.b16 %v581, %v577
        %v706 = vpack.c.b16 %v582, %v578
        %v707 = vpack.c.b16 %v583, %v579
        %v708 = vpack.c.b16 %v588, %v584
        %v709 = vpack.c.b16 %v589, %v585
        %v710 = vpack.c.b16 %v590, %v586
        %v711 = vpack.c.b16 %v591, %v587
        %v712 = vpack.c.b16 %v596, %v592
        %v713 = vpack.c.b16 %v597, %v593
        %v714 = vpack.c.b16 %v598, %v594
        %v715 = vpack.c.b16 %v599, %v595
        %v716 = vpack.c.b16 %v604, %v600
        %v717 = vpack.c.b16 %v605, %v601
        %v718 = vpack.c.b16 %v606, %v602
        %v719 = vpack.c.b16 %v607, %v603
        %v720 = vpack.c.b16 %v612, %v608
        %v721 = vpack.c.b16 %v613, %v609
        %v722 = vpack.c.b16 %v614, %v610
        %v723 = vpack.c.b16 %v615, %v611
        %v724 = vpack.c.b16 %v620, %v616
        %v725 = vpack.c.b16 %v621, %v617
        %v726 = vpack.c.b16 %v622, %v618
        %v727 = vpack.c.b16 %v623, %v619
        %v728 = vpack.c.b16 %v628, %v624
        %v729 = vpack.c.b16 %v629, %v625
        %v730 = vpack.c.b16 %v630, %v626
        %v731 = vpack.c.b16 %v631, %v627
        %vm832 = vcmask 130048
        %v834 = vsel %vm832, %v328, 0
        %836 = vmatprep.subr.bf16.mxu0 %v633
        %837 = vmatpush1.bf16.msra.mxu0 %v632
        %838 = vmatprep.subr.bf16.mxu0 %v637
        %839 = vmatpush1.bf16.msra.mxu0 %v636
        %840 = vmatprep.subr.bf16.mxu0 %v641
        %841 = vmatpush1.bf16.msra.mxu0 %v640
        %842 = vmatprep.subr.bf16.mxu0 %v645
        %843 = vmatpush1.bf16.msra.mxu0 %v644
        %844 = vmatprep.subr.bf16.mxu0 %v649
        %845 = vmatpush1.bf16.msra.mxu0 %v648
        %846 = vmatprep.subr.bf16.mxu0 %v653
        %847 = vmatpush1.bf16.msra.mxu0 %v652
        %848 = vmatprep.subr.bf16.mxu0 %v657
        %849 = vmatpush1.bf16.msra.mxu0 %v656
        %850 = vmatprep.subr.bf16.mxu0 %v661
        %851 = vmatpush1.bf16.msra.mxu0 %v660
        %852 = vmatprep.subr.bf16.mxu0 %v665
        %853 = vmatpush1.bf16.msra.mxu0 %v664
        %854 = vmatprep.subr.bf16.mxu0 %v669
        %855 = vmatpush1.bf16.msra.mxu0 %v668
        %856 = vmatprep.subr.bf16.mxu0 %v673
        %857 = vmatpush1.bf16.msra.mxu0 %v672
        %858 = vmatprep.subr.bf16.mxu0 %v677
        %859 = vmatpush1.bf16.msra.mxu0 %v676
        %860 = vmatprep.subr.bf16.mxu0 %v681
        %861 = vmatpush1.bf16.msra.mxu0 %v680
        %862 = vmatprep.subr.bf16.mxu0 %v685
        %863 = vmatpush1.bf16.msra.mxu0 %v684
        %864 = vmatprep.subr.bf16.mxu0 %v689
        %865 = vmatpush1.bf16.msra.mxu0 %v688
        %866 = vmatprep.subr.bf16.mxu0 %v693
        %867 = vmatpush1.bf16.msra.mxu0 %v692
        %868 = vmatprep.mubr.bf16.mxu0 %v326
        %869 = vmatmul.mubr.bf16.gmra.mrb[0].mxu0 %v325
        %v870 = vpop.f32.mrb[0].mxu0
        %v871 = vadd.f32 0.0, %v870
        %v872 = vpop.f32.mrb[0].mxu0
        %v873 = vadd.f32 0.0, %v872
        %v874 = vpop.f32.mrb[0].mxu0
        %v875 = vpop.f32.mrb[0].mxu0
        %876 = vdwg.mxu0
        %877 = vmatprep.subr.bf16.mxu0 %v697
        %878 = vmatpush1.bf16.msra.mxu0 %v696
        %879 = vmatprep.subr.bf16.mxu0 %v701
        %880 = vmatpush1.bf16.msra.mxu0 %v700
        %881 = vmatprep.subr.bf16.mxu0 %v705
        %882 = vmatpush1.bf16.msra.mxu0 %v704
        %883 = vmatprep.subr.bf16.mxu0 %v709
        %884 = vmatpush1.bf16.msra.mxu0 %v708
        %885 = vmatprep.subr.bf16.mxu0 %v713
        %886 = vmatpush1.bf16.msra.mxu0 %v712
        %887 = vmatprep.subr.bf16.mxu0 %v717
        %888 = vmatpush1.bf16.msra.mxu0 %v716
        %889 = vmatprep.subr.bf16.mxu0 %v721
        %890 = vmatpush1.bf16.msra.mxu0 %v720
        %891 = vmatprep.subr.bf16.mxu0 %v725
        %892 = vmatpush1.bf16.msra.mxu0 %v724
        %893 = vmatprep.subr.bf16.mxu0 %v729
        %894 = vmatpush1.bf16.msra.mxu0 %v728
        %895 = vmatprep.subr.bf16.mxu0 0
        %896 = vmatpush1.bf16.msra.mxu0 0
        %897 = vmatprep.subr.bf16.mxu0 0
        %898 = vmatpush1.bf16.msra.mxu0 0
        %899 = vmatprep.subr.bf16.mxu0 0
        %900 = vmatpush1.bf16.msra.mxu0 0
        %901 = vmatprep.subr.bf16.mxu0 0
        %902 = vmatpush1.bf16.msra.mxu0 0
        %903 = vmatprep.subr.bf16.mxu0 0
        %904 = vmatpush1.bf16.msra.mxu0 0
        %905 = vmatprep.subr.bf16.mxu0 0
        %906 = vmatpush1.bf16.msra.mxu0 0
        %907 = vmatprep.subr.bf16.mxu0 0
        %908 = vmatpush1.bf16.msra.mxu0 0
        %909 = vmatprep.mubr.bf16.mxu0 %v834
        %910 = vmatmul.mubr.bf16.gmra.mrb[0].mxu0 %v327
        %v911 = vpop.f32.mrb[0].mxu0
        %v912 = vadd.f32 %v871, %v911
        %v913 = vpop.f32.mrb[0].mxu0
        %v914 = vadd.f32 %v873, %v913
        %v915 = vpop.f32.mrb[0].mxu0
        %v916 = vpop.f32.mrb[0].mxu0
        %917 = vdwg.mxu0
        %918 = vmatprep.subr.bf16.mxu0 %v635
        %919 = vmatpush1.bf16.msra.mxu0 %v634
        %920 = vmatprep.subr.bf16.mxu0 %v639
        %921 = vmatpush1.bf16.msra.mxu0 %v638
        %922 = vmatprep.subr.bf16.mxu0 %v643
        %923 = vmatpush1.bf16.msra.mxu0 %v642
        %924 = vmatprep.subr.bf16.mxu0 %v647
        %925 = vmatpush1.bf16.msra.mxu0 %v646
        %926 = vmatprep.subr.bf16.mxu0 %v651
        %927 = vmatpush1.bf16.msra.mxu0 %v650
        %928 = vmatprep.subr.bf16.mxu0 %v655
        %929 = vmatpush1.bf16.msra.mxu0 %v654
        %930 = vmatprep.subr.bf16.mxu0 %v659
        %931 = vmatpush1.bf16.msra.mxu0 %v658
        %932 = vmatprep.subr.bf16.mxu0 %v663
        %933 = vmatpush1.bf16.msra.mxu0 %v662
        %934 = vmatprep.subr.bf16.mxu0 %v667
        %935 = vmatpush1.bf16.msra.mxu0 %v666
        %936 = vmatprep.subr.bf16.mxu0 %v671
        %937 = vmatpush1.bf16.msra.mxu0 %v670
        %938 = vmatprep.subr.bf16.mxu0 %v675
        %939 = vmatpush1.bf16.msra.mxu0 %v674
        %940 = vmatprep.subr.bf16.mxu0 %v679
        %941 = vmatpush1.bf16.msra.mxu0 %v678
        %942 = vmatprep.subr.bf16.mxu0 %v683
        %943 = vmatpush1.bf16.msra.mxu0 %v682
        %944 = vmatprep.subr.bf16.mxu0 %v687
        %945 = vmatpush1.bf16.msra.mxu0 %v686
        %946 = vmatprep.subr.bf16.mxu0 %v691
        %947 = vmatpush1.bf16.msra.mxu0 %v690
        %948 = vmatprep.subr.bf16.mxu0 %v695
        %949 = vmatpush1.bf16.msra.mxu0 %v694
        %950 = vmatprep.mubr.bf16.mxu0 %v326
        %951 = vmatmul.mubr.bf16.gmra.mrb[0].mxu0 %v325
        %v952 = vpop.f32.mrb[0].mxu0
        %v953 = vadd.f32 0.0, %v952
        %v954 = vpop.f32.mrb[0].mxu0
        %v955 = vadd.f32 0.0, %v954
        %v956 = vpop.f32.mrb[0].mxu0
        %v957 = vpop.f32.mrb[0].mxu0
        %958 = vdwg.mxu0
        %959 = vmatprep.subr.bf16.mxu0 %v699
        %960 = vmatpush1.bf16.msra.mxu0 %v698
        %961 = vmatprep.subr.bf16.mxu0 %v703
        %962 = vmatpush1.bf16.msra.mxu0 %v702
        %963 = vmatprep.subr.bf16.mxu0 %v707
        %964 = vmatpush1.bf16.msra.mxu0 %v706
        %965 = vmatprep.subr.bf16.mxu0 %v711
        %966 = vmatpush1.bf16.msra.mxu0 %v710
        %967 = vmatprep.subr.bf16.mxu0 %v715
        %968 = vmatpush1.bf16.msra.mxu0 %v714
        %969 = vmatprep.subr.bf16.mxu0 %v719
        %970 = vmatpush1.bf16.msra.mxu0 %v718
        %971 = vmatprep.subr.bf16.mxu0 %v723
        %972 = vmatpush1.bf16.msra.mxu0 %v722
        %973 = vmatprep.subr.bf16.mxu0 %v727
        %974 = vmatpush1.bf16.msra.mxu0 %v726
        %975 = vmatprep.subr.bf16.mxu0 %v731
        %976 = vmatpush1.bf16.msra.mxu0 %v730
        %977 = vmatprep.subr.bf16.mxu0 0
        %978 = vmatpush1.bf16.msra.mxu0 0
        %979 = vmatprep.subr.bf16.mxu0 0
        %980 = vmatpush1.bf16.msra.mxu0 0
        %981 = vmatprep.subr.bf16.mxu0 0
        %982 = vmatpush1.bf16.msra.mxu0 0
        %983 = vmatprep.subr.bf16.mxu0 0
        %984 = vmatpush1.bf16.msra.mxu0 0
        %985 = vmatprep.subr.bf16.mxu0 0
        %986 = vmatpush1.bf16.msra.mxu0 0
        %987 = vmatprep.subr.bf16.mxu0 0
        %988 = vmatpush1.bf16.msra.mxu0 0
        %989 = vmatprep.subr.bf16.mxu0 0
        %990 = vmatpush1.bf16.msra.mxu0 0
        %991 = vmatprep.mubr.bf16.mxu0 %v834
        %992 = vmatmul.mubr.bf16.gmra.mrb[0].mxu0 %v327
        %v993 = vpop.f32.mrb[0].mxu0
        %v994 = vadd.f32 %v953, %v993
        %v995 = vpop.f32.mrb[0].mxu0
        %v996 = vadd.f32 %v955, %v995
        %v997 = vpop.f32.mrb[0].mxu0
        %v998 = vpop.f32.mrb[0].mxu0
        %999 = vdwg.mxu0
        %v1000 = vmul.f32 %v912, %v912
        %v1001 = vmul.f32 %v914, %v914
        %v1002 = vmul.f32 %v994, %v994
        %v1003 = vmul.f32 %v996, %v996
        %v1004 = vpack.c.bf16 %v1000, %v1000
        %v1005 = vpack.c.bf16 %v1001, %v1001
        %v1006 = vpack.c.bf16 %v1002, %v1002
        %v1007 = vpack.c.bf16 %v1003, %v1003
        %v1008 = vld [vmem:[#allocation7] sm:$0xf]
        %v1009 = vld [vmem:[#allocation7 + $0x4] sm:$0xf]
        %v1010 = vld [vmem:[#allocation7 + $0x8] sm:$0xf]
        %v1011 = vld [vmem:[#allocation7 + $0xc] sm:$0xf]
        %v1012 = vld [vmem:[#allocation7 + $0x10] sm:$0xf]
        %v1013 = vld [vmem:[#allocation7 + $0x14] sm:$0xf]
        %v1014 = vld [vmem:[#allocation7 + $0x18] sm:$0xf]
        %v1015 = vld [vmem:[#allocation7 + $0x1c] sm:$0xf]
        %v1016 = vld [vmem:[#allocation7 + $0x20] sm:$0xf]
        %v1017 = vld [vmem:[#allocation7 + $0x24] sm:$0xf]
        %v1018 = vld [vmem:[#allocation7 + $0x28] sm:$0xf]
        %v1019 = vld [vmem:[#allocation7 + $0x2c] sm:$0xf]
        %v1020 = vld [vmem:[#allocation7 + $0x30] sm:$0xf]
        %v1021 = vld [vmem:[#allocation7 + $0x34] sm:$0xf]
        %v1022 = vld [vmem:[#allocation7 + $0x38] sm:$0xf]
        %v1023 = vld [vmem:[#allocation7 + $0x3c] sm:$0xf]
        %v1024 = vld [vmem:[#allocation7 + $0x40] sm:$0xf]
        %v1025 = vld [vmem:[#allocation7 + $0x44] sm:$0xf]
        %v1026 = vld [vmem:[#allocation7 + $0x48] sm:$0xf]
        %v1027 = vld [vmem:[#allocation7 + $0x4c] sm:$0xf]
        %v1028 = vld [vmem:[#allocation7 + $0x50] sm:$0xf]
        %v1029 = vld [vmem:[#allocation7 + $0x54] sm:$0xf]
        %v1030 = vld [vmem:[#allocation7 + $0x58] sm:$0xf]
        %v1031 = vld [vmem:[#allocation7 + $0x5c] sm:$0xf]
        %v1032 = vld [vmem:[#allocation7 + $0x60] sm:$0xf]
        %v1033 = vld [vmem:[#allocation7 + $0x64] sm:$0xf]
        %v1034 = vld [vmem:[#allocation7 + $0x68] sm:$0xf]
        %v1035 = vld [vmem:[#allocation7 + $0x6c] sm:$0xf]
        %v1036 = vld [vmem:[#allocation7 + $0x70] sm:$0xf]
        %v1037 = vld [vmem:[#allocation7 + $0x74] sm:$0xf]
        %v1038 = vld [vmem:[#allocation7 + $0x78] sm:$0xf]
        %v1039 = vld [vmem:[#allocation7 + $0x7c] sm:$0xf]
        %v1040 = vld [vmem:[#allocation7 + $0x80] sm:$0xf]
        %v1041 = vld [vmem:[#allocation7 + $0x84] sm:$0xf]
        %v1042 = vld [vmem:[#allocation7 + $0x88] sm:$0xf]
        %v1043 = vld [vmem:[#allocation7 + $0x8c] sm:$0xf]
        %v1044 = vld [vmem:[#allocation7 + $0x90] sm:$0xf]
        %v1045 = vld [vmem:[#allocation7 + $0x94] sm:$0xf]
        %v1046 = vld [vmem:[#allocation7 + $0x98] sm:$0xf]
        %v1047 = vld [vmem:[#allocation7 + $0x9c] sm:$0xf]
        %v1048 = vld [vmem:[#allocation7 + $0xa0] sm:$0xf]
        %v1049 = vld [vmem:[#allocation7 + $0xa4] sm:$0xf]
        %v1050 = vld [vmem:[#allocation7 + $0xa8] sm:$0xf]
        %v1051 = vld [vmem:[#allocation7 + $0xac] sm:$0xf]
        %v1052 = vld [vmem:[#allocation7 + $0xb0] sm:$0xf]
        %v1053 = vld [vmem:[#allocation7 + $0xb4] sm:$0xf]
        %v1054 = vld [vmem:[#allocation7 + $0xb8] sm:$0xf]
        %v1055 = vld [vmem:[#allocation7 + $0xbc] sm:$0xf]
        %v1056 = vld [vmem:[#allocation7 + $0xc0] sm:$0xf]
        %v1057 = vld [vmem:[#allocation7 + $0xc4] sm:$0xf]
        %v1058 = vld [vmem:[#allocation7 + $0xc8] sm:$0xf]
        %v1059 = vld [vmem:[#allocation7 + $0xcc] sm:$0xf]
        %v1060 = vld [vmem:[#allocation7 + $0xd0] sm:$0xf]
        %v1061 = vld [vmem:[#allocation7 + $0xd4] sm:$0xf]
        %v1062 = vld [vmem:[#allocation7 + $0xd8] sm:$0xf]
        %v1063 = vld [vmem:[#allocation7 + $0xdc] sm:$0xf]
        %v1064 = vld [vmem:[#allocation7 + $0xe0] sm:$0xf]
        %v1065 = vld [vmem:[#allocation7 + $0xe4] sm:$0xf]
        %v1066 = vld [vmem:[#allocation7 + $0xe8] sm:$0xf]
        %v1067 = vld [vmem:[#allocation7 + $0xec] sm:$0xf]
        %v1068 = vld [vmem:[#allocation7 + $0xf0] sm:$0xf]
        %v1069 = vld [vmem:[#allocation7 + $0xf4] sm:$0xf]
        %v1070 = vld [vmem:[#allocation7 + $0xf8] sm:$0xf]
        %v1071 = vld [vmem:[#allocation7 + $0xfc] sm:$0xf]
        %v1136 = vunpack.c.l.b16 %v1008
        %v1137 = vunpack.c.l.b16 %v1009
        %v1138 = vunpack.c.l.b16 %v1010
        %v1139 = vunpack.c.l.b16 %v1011
        %v1140 = vunpack.c.l.b16 %v1012
        %v1141 = vunpack.c.l.b16 %v1013
        %v1142 = vunpack.c.l.b16 %v1014
        %v1143 = vunpack.c.l.b16 %v1015
        %v1144 = vunpack.c.l.b16 %v1016
        %v1145 = vunpack.c.l.b16 %v1017
        %v1146 = vunpack.c.l.b16 %v1018
        %v1147 = vunpack.c.l.b16 %v1019
        %v1148 = vunpack.c.l.b16 %v1020
        %v1149 = vunpack.c.l.b16 %v1021
        %v1150 = vunpack.c.l.b16 %v1022
        %v1151 = vunpack.c.l.b16 %v1023
        %v1152 = vunpack.c.l.b16 %v1024
        %v1153 = vunpack.c.l.b16 %v1025
        %v1154 = vunpack.c.l.b16 %v1026
        %v1155 = vunpack.c.l.b16 %v1027
        %v1156 = vunpack.c.l.b16 %v1028
        %v1157 = vunpack.c.l.b16 %v1029
        %v1158 = vunpack.c.l.b16 %v1030
        %v1159 = vunpack.c.l.b16 %v1031
        %v1160 = vunpack.c.l.b16 %v1032
        %v1161 = vunpack.c.l.b16 %v1033
        %v1162 = vunpack.c.l.b16 %v1034
        %v1163 = vunpack.c.l.b16 %v1035
        %v1164 = vunpack.c.l.b16 %v1036
        %v1165 = vunpack.c.l.b16 %v1037
        %v1166 = vunpack.c.l.b16 %v1038
        %v1167 = vunpack.c.l.b16 %v1039
        %v1168 = vunpack.c.l.b16 %v1040
        %v1169 = vunpack.c.l.b16 %v1041
        %v1170 = vunpack.c.l.b16 %v1042
        %v1171 = vunpack.c.l.b16 %v1043
        %v1172 = vunpack.c.l.b16 %v1044
        %v1173 = vunpack.c.l.b16 %v1045
        %v1174 = vunpack.c.l.b16 %v1046
        %v1175 = vunpack.c.l.b16 %v1047
        %v1176 = vunpack.c.l.b16 %v1048
        %v1177 = vunpack.c.l.b16 %v1049
        %v1178 = vunpack.c.l.b16 %v1050
        %v1179 = vunpack.c.l.b16 %v1051
        %v1180 = vunpack.c.l.b16 %v1052
        %v1181 = vunpack.c.l.b16 %v1053
        %v1182 = vunpack.c.l.b16 %v1054
        %v1183 = vunpack.c.l.b16 %v1055
        %v1184 = vunpack.c.l.b16 %v1056
        %v1185 = vunpack.c.l.b16 %v1057
        %v1186 = vunpack.c.l.b16 %v1058
        %v1187 = vunpack.c.l.b16 %v1059
        %v1188 = vunpack.c.l.b16 %v1060
        %v1189 = vunpack.c.l.b16 %v1061
        %v1190 = vunpack.c.l.b16 %v1062
        %v1191 = vunpack.c.l.b16 %v1063
        %v1192 = vunpack.c.l.b16 %v1064
        %v1193 = vunpack.c.l.b16 %v1065
        %v1194 = vunpack.c.l.b16 %v1066
        %v1195 = vunpack.c.l.b16 %v1067
        %v1196 = vunpack.c.l.b16 %v1068
        %v1197 = vunpack.c.l.b16 %v1069
        %v1198 = vunpack.c.l.b16 %v1070
        %v1199 = vunpack.c.l.b16 %v1071
        %v1200 = vpack.c.b16 %v1137, %v1136
        %v1201 = vpack.c.b16 %v1139, %v1138
        %v1202 = vpack.c.b16 %v1141, %v1140
        %v1203 = vpack.c.b16 %v1143, %v1142
        %v1204 = vpack.c.b16 %v1145, %v1144
        %v1205 = vpack.c.b16 %v1147, %v1146
        %v1206 = vpack.c.b16 %v1149, %v1148
        %v1207 = vpack.c.b16 %v1151, %v1150
        %v1208 = vpack.c.b16 %v1153, %v1152
        %v1209 = vpack.c.b16 %v1155, %v1154
        %v1210 = vpack.c.b16 %v1157, %v1156
        %v1211 = vpack.c.b16 %v1159, %v1158
        %v1212 = vpack.c.b16 %v1161, %v1160
        %v1213 = vpack.c.b16 %v1163, %v1162
        %v1214 = vpack.c.b16 %v1165, %v1164
        %v1215 = vpack.c.b16 %v1167, %v1166
        %v1216 = vpack.c.b16 %v1169, %v1168
        %v1217 = vpack.c.b16 %v1171, %v1170
        %v1218 = vpack.c.b16 %v1173, %v1172
        %v1219 = vpack.c.b16 %v1175, %v1174
        %v1220 = vpack.c.b16 %v1177, %v1176
        %v1221 = vpack.c.b16 %v1179, %v1178
        %v1222 = vpack.c.b16 %v1181, %v1180
        %v1223 = vpack.c.b16 %v1183, %v1182
        %v1224 = vpack.c.b16 %v1185, %v1184
        %v1225 = vpack.c.b16 %v1187, %v1186
        %v1226 = vpack.c.b16 %v1189, %v1188
        %v1227 = vpack.c.b16 %v1191, %v1190
        %v1228 = vpack.c.b16 %v1193, %v1192
        %v1229 = vpack.c.b16 %v1195, %v1194
        %v1230 = vpack.c.b16 %v1197, %v1196
        %v1231 = vpack.c.b16 %v1199, %v1198
        %1264 = vmatprep.subr.bf16.mxu0 0
        %1265 = vmatpush1.bf16.msra.mxu0 %v1200
        %1266 = vmatprep.subr.bf16.mxu0 0
        %1267 = vmatpush1.bf16.msra.mxu0 %v1201
        %1268 = vmatprep.subr.bf16.mxu0 0
        %1269 = vmatpush1.bf16.msra.mxu0 %v1202
        %1270 = vmatprep.subr.bf16.mxu0 0
        %1271 = vmatpush1.bf16.msra.mxu0 %v1203
        %1272 = vmatprep.subr.bf16.mxu0 0
        %1273 = vmatpush1.bf16.msra.mxu0 %v1204
        %1274 = vmatprep.subr.bf16.mxu0 0
        %1275 = vmatpush1.bf16.msra.mxu0 %v1205
        %1276 = vmatprep.subr.bf16.mxu0 0
        %1277 = vmatpush1.bf16.msra.mxu0 %v1206
        %1278 = vmatprep.subr.bf16.mxu0 0
        %1279 = vmatpush1.bf16.msra.mxu0 %v1207
        %1280 = vmatprep.subr.bf16.mxu0 0
        %1281 = vmatpush1.bf16.msra.mxu0 %v1208
        %1282 = vmatprep.subr.bf16.mxu0 0
        %1283 = vmatpush1.bf16.msra.mxu0 %v1209
        %1284 = vmatprep.subr.bf16.mxu0 0
        %1285 = vmatpush1.bf16.msra.mxu0 %v1210
        %1286 = vmatprep.subr.bf16.mxu0 0
        %1287 = vmatpush1.bf16.msra.mxu0 %v1211
        %1288 = vmatprep.subr.bf16.mxu0 0
        %1289 = vmatpush1.bf16.msra.mxu0 %v1212
        %1290 = vmatprep.subr.bf16.mxu0 0
        %1291 = vmatpush1.bf16.msra.mxu0 %v1213
        %1292 = vmatprep.subr.bf16.mxu0 0
        %1293 = vmatpush1.bf16.msra.mxu0 %v1214
        %1294 = vmatprep.subr.bf16.mxu0 0
        %1295 = vmatpush1.bf16.msra.mxu0 %v1215
        %1296 = vmatprep.mubr.bf16.mxu0 %v1005
        %1297 = vmatmul.mubr.bf16.gmra.mrb[0].mxu0 %v1004
        %v1298 = vpop.f32.mrb[0].mxu0
        %v1299 = vadd.f32 0.0, %v1298
        %v1300 = vpop.f32.mrb[0].mxu0
        %v1301 = vpop.f32.mrb[0].mxu0
        %v1302 = vpop.f32.mrb[0].mxu0
        %1303 = vdwg.mxu0
        %1304 = vmatprep.subr.bf16.mxu0 0
        %1305 = vmatpush1.bf16.msra.mxu0 %v1216
        %1306 = vmatprep.subr.bf16.mxu0 0
        %1307 = vmatpush1.bf16.msra.mxu0 %v1217
        %1308 = vmatprep.subr.bf16.mxu0 0
        %1309 = vmatpush1.bf16.msra.mxu0 %v1218
        %1310 = vmatprep.subr.bf16.mxu0 0
        %1311 = vmatpush1.bf16.msra.mxu0 %v1219
        %1312 = vmatprep.subr.bf16.mxu0 0
        %1313 = vmatpush1.bf16.msra.mxu0 %v1220
        %1314 = vmatprep.subr.bf16.mxu0 0
        %1315 = vmatpush1.bf16.msra.mxu0 %v1221
        %1316 = vmatprep.subr.bf16.mxu0 0
        %1317 = vmatpush1.bf16.msra.mxu0 %v1222
        %1318 = vmatprep.subr.bf16.mxu0 0
        %1319 = vmatpush1.bf16.msra.mxu0 %v1223
        %1320 = vmatprep.subr.bf16.mxu0 0
        %1321 = vmatpush1.bf16.msra.mxu0 %v1224
        %1322 = vmatprep.subr.bf16.mxu0 0
        %1323 = vmatpush1.bf16.msra.mxu0 %v1225
        %1324 = vmatprep.subr.bf16.mxu0 0
        %1325 = vmatpush1.bf16.msra.mxu0 %v1226
        %1326 = vmatprep.subr.bf16.mxu0 0
        %1327 = vmatpush1.bf16.msra.mxu0 %v1227
        %1328 = vmatprep.subr.bf16.mxu0 0
        %1329 = vmatpush1.bf16.msra.mxu0 %v1228
        %1330 = vmatprep.subr.bf16.mxu0 0
        %1331 = vmatpush1.bf16.msra.mxu0 %v1229
        %1332 = vmatprep.subr.bf16.mxu0 0
        %1333 = vmatpush1.bf16.msra.mxu0 %v1230
        %1334 = vmatprep.subr.bf16.mxu0 0
        %1335 = vmatpush1.bf16.msra.mxu0 %v1231
        %1336 = vmatprep.mubr.bf16.mxu0 %v1007
        %1337 = vmatmul.mubr.bf16.gmra.mrb[0].mxu0 %v1006
        %v1338 = vpop.f32.mrb[0].mxu0
        %v1339 = vadd.f32 %v1299, %v1338
        %v1340 = vpop.f32.mrb[0].mxu0
        %v1341 = vpop.f32.mrb[0].mxu0
        %v1342 = vpop.f32.mrb[0].mxu0
        %1343 = vdwg.mxu0
        %v1344 = vmax.f32 %v1339, 1e-10
        %v1345 = vlog2.pop %v1344
        %v1346 = vmul.f32 %v1345, 0.6931472
        %v1347 = vmul.f32 %v1346, 0.4342945
        %1348 = vst [vmem:[%s215] sm:$0xff] %v1347
        %s1349 = sand.u32 %s97, 1
        %s1350 = scalar_lea.sflag [#allocation4], %s1349
        %s1351 = sand.u32 %s97, 1
        %s1352 = smul.addr %s1351, 8
        %s1353 = scalar_lea.vmem [#allocation8], %s1352
        // Predicated region
        $region45: #{tpu_custom_call.1} parent=31 // pred_check
          %p1354 = pneg %p107
        $region46: #{tpu_custom_call.1} parent=31 // pred_check_branch
          %1356 = sbr.rel (%p1354) target = $region48
        $region47: #{tpu_custom_call.1} parent=31 // pred_region
          %s1358 = ssub.s32 128, 128
          %1359 = vsyncadd %s1350, %s1358
          %s1360 = smul.addr %s21, 128
          %s1361 = scalar_lea.hbm %s3, %s1360
          %s1363 = sshll.u32 %s1353, 4
          %s1364 = int_to_ptr.vmem [resolvable:$true] %s1363
          %1366 = dma.vmem_to_hbm [thread:$0]  %s1364, 128, %s1361, %s1350
        $region48: #{tpu_custom_call.1} parent=31 // pred_fallthru
          _
      $region32: #{tpu_custom_call.1} parent=5 // pred_fallthru
        _
      %p1367 = scmp.le.s32.totalorder 2, %s16
      // Predicated region
      $region49: #{tpu_custom_call.1} parent=5 // pred_check
        %p1368 = pneg %p1367
      $region50: #{tpu_custom_call.1} parent=5 // pred_check_branch
        %1370 = sbr.rel (%p1368) target = $region52
      $region51: #{tpu_custom_call.1} parent=5 // pred_region
        %s1371 = ssub.s32 %s16, 2
        // Predicated region
        $region53: #{tpu_custom_call.1} parent=51 // pred_check
          %p1372 = pneg %p113
        $region54: #{tpu_custom_call.1} parent=51 // pred_check_branch
          %1374 = sbr.rel (%p1372) target = $region56
        $region55: #{tpu_custom_call.1} parent=51 // pred_region
          %s1375 = sand.u32 %s98, 1
          %s1376 = scalar_lea.sflag [#allocation4], %s1375
          %s1377 = sand.u32 %s98, 1
          %s1378 = smul.addr %s1377, 8
          %s1379 = scalar_lea.vmem [#allocation8], %s1378
          %1380 = dma.done %s1376, 128
        $region56: #{tpu_custom_call.1} parent=51 // pred_fallthru
          _
      $region52: #{tpu_custom_call.1} parent=5 // pred_fallthru
        _
    $region6: #{tpu_custom_call.1} parent=1 // loop_footer
      %s20 = sadd.s32 1, %s16
    $region7: #{tpu_custom_call.1} parent=1 // loop_footer_branch
      %15 = sbr.rel target = $region3
    $region8: #{tpu_custom_call.1} parent=1 // loop_exit
      _
    %1381 = vsyncpa [#allocation3], 1
    %s1382 = scalar_lea.sflag [#allocation3], 1
    %1383 = vsyncpa %s1382, 1
    %1384 = vsyncpa [#allocation6], 1
    %1385 = vsyncpa [#allocation4], 1
    %s1386 = scalar_lea.sflag [#allocation4], 1
    %1387 = vsyncpa %s1386, 1

</llo_original>
